<compile_context>
chip_gen: v7x
topology: tpu7x:2x2x1
jax: 0.10.0
libtpu: 0.0.40
codegen_flags: <defaults>
</compile_context>

<pallas_src>
import functools

import jax
import jax.numpy as jnp
from jax.experimental import pallas as pl
from jax.experimental.pallas import tpu as pltpu

BN_EPS = 1e-5
LANE = 128
SUB = 8
TM_MAX = 256            # node-row tile
TK_MAX = 512            # adjacency contraction tile
VMEM_LIMIT = 48 * 1024 * 1024


def _round_up(x, m):
    return ((x + m - 1) // m) * m


def _node_tiling(n):
    """Pick (n_pad, tm, tk) for the node axis."""
    n_pad = _round_up(n, LANE)
    if n_pad <= TK_MAX:
        return n_pad, n_pad, n_pad           # single tile for small graphs
    n_pad = _round_up(n, TK_MAX)             # TK_MAX is a multiple of TM_MAX
    return n_pad, TM_MAX, TK_MAX


def _pad2(a, shape):
    return jnp.zeros(shape, jnp.float32).at[: a.shape[0], : a.shape[1]].set(a)


def _pad1(a, n):
    return jnp.zeros((n,), jnp.float32).at[: a.shape[0]].set(a)


# ---------------------------------------------------------------------------
# Kernel A: tiled GINConv aggregation + first MLP Linear + partial BN1 stats.
#   agg_i = sum_k A[i, k] @ h[k]          (accumulated over the k grid axis)
#   z_i   = ((1 + eps) * h_i + agg_i) @ W1 + b1     (written at the last k)
#   stats = per-row-tile [sum(z), sum(z^2)]  (so BN stays global under tiling)
# ---------------------------------------------------------------------------
def _conv_phase1_kernel(eps, adj_ref, hn_ref, hs_ref, mask_ref, w1_ref, b1_ref,
                        z_ref, stats_ref, agg_ref):
    k = pl.program_id(1)

    @pl.when(k == 0)
    def _():
        agg_ref[...] = jnp.zeros_like(agg_ref)

    agg_ref[...] += jnp.dot(adj_ref[...], hn_ref[...],
                            preferred_element_type=jnp.float32)

    @pl.when(k == pl.num_programs(1) - 1)
    def _():
        agg = agg_ref[...] + (1.0 + eps) * hs_ref[...]
        z = jnp.dot(agg, w1_ref[...], preferred_element_type=jnp.float32)
        z = (z + b1_ref[...]) * mask_ref[...]          # zero padded node rows
        z_ref[...] = z
        ssum = jnp.sum(z, axis=0, keepdims=True)
        ssq = jnp.sum(z * z, axis=0, keepdims=True)
        hd = z.shape[1]
        stats_ref[0:8, :] = jnp.broadcast_to(ssum, (8, hd))
        stats_ref[8:16, :] = jnp.broadcast_to(ssq, (8, hd))


def _conv_phase1(adj_bf, h_bf, h_f32, mask, w1, b1, *, n_pad, tm, tk, f_pad,
                 h_pad, eps):
    r, kt = n_pad // tm, n_pad // tk
    grid_spec = pltpu.PrefetchScalarGridSpec(
        num_scalar_prefetch=0,
        grid=(r, kt),
        in_specs=[
            pl.BlockSpec((tm, tk), lambda i, k: (i, k)),         # adjacency tile
            pl.BlockSpec((tk, f_pad), lambda i, k: (k, 0)),      # neighbor feats (bf16)
            pl.BlockSpec((tm, f_pad), lambda i, k: (i, 0)),      # self feats (f32)
            pl.BlockSpec((tm, 1), lambda i, k: (i, 0)),          # real-node mask
            pl.BlockSpec((f_pad, h_pad), lambda i, k: (0, 0)),   # W1
            pl.BlockSpec((1, h_pad), lambda i, k: (0, 0)),       # b1
        ],
        out_specs=(
            pl.BlockSpec((tm, h_pad), lambda i, k: (i, 0)),
            pl.BlockSpec((None, 16, h_pad), lambda i, k: (i, 0, 0)),
        ),
        scratch_shapes=[pltpu.VMEM((tm, f_pad), jnp.float32)],
    )
    return pl.pallas_call(
        functools.partial(_conv_phase1_kernel, eps),
        out_shape=(jax.ShapeDtypeStruct((n_pad, h_pad), jnp.float32),
                   jax.ShapeDtypeStruct((r, 16, h_pad), jnp.float32)),
        grid_spec=grid_spec,
        compiler_params=pltpu.CompilerParams(
            dimension_semantics=("parallel", "arbitrary"),
            vmem_limit_bytes=VMEM_LIMIT),
    )(adj_bf, h_bf, h_f32, mask, w1, b1)


# ---------------------------------------------------------------------------
# Kernel B: BN1(affine, precombined scale/shift) + ReLU + second MLP Linear,
#           plus partial stats for the outer BN.  Row-parallel.
# ---------------------------------------------------------------------------
def _conv_phase2_kernel(z_ref, vecs_ref, w2_ref, mask_ref, h2_ref, stats_ref):
    scale = vecs_ref[0:1, :]
    shift = vecs_ref[1:2, :]
    b2 = vecs_ref[2:3, :]
    a = jnp.maximum(z_ref[...] * scale + shift, 0.0)
    h2 = jnp.dot(a, w2_ref[...], preferred_element_type=jnp.float32)
    h2 = (h2 + b2) * mask_ref[...]
    h2_ref[...] = h2
    ssum = jnp.sum(h2, axis=0, keepdims=True)
    ssq = jnp.sum(h2 * h2, axis=0, keepdims=True)
    hd = h2.shape[1]
    stats_ref[0:8, :] = jnp.broadcast_to(ssum, (8, hd))
    stats_ref[8:16, :] = jnp.broadcast_to(ssq, (8, hd))


def _conv_phase2(z, vecs, w2, mask, *, n_pad, tm, h_pad):
    r = n_pad // tm
    grid_spec = pltpu.PrefetchScalarGridSpec(
        num_scalar_prefetch=0,
        grid=(r,),
        in_specs=[
            pl.BlockSpec((tm, h_pad), lambda i: (i, 0)),
            pl.BlockSpec((8, h_pad), lambda i: (0, 0)),          # packed vectors
            pl.BlockSpec((h_pad, h_pad), lambda i: (0, 0)),      # W2
            pl.BlockSpec((tm, 1), lambda i: (i, 0)),
        ],
        out_specs=(
            pl.BlockSpec((tm, h_pad), lambda i: (i, 0)),
            pl.BlockSpec((None, 16, h_pad), lambda i: (i, 0, 0)),
        ),
    )
    return pl.pallas_call(
        _conv_phase2_kernel,
        out_shape=(jax.ShapeDtypeStruct((n_pad, h_pad), jnp.float32),
                   jax.ShapeDtypeStruct((r, 16, h_pad), jnp.float32)),
        grid_spec=grid_spec,
        compiler_params=pltpu.CompilerParams(
            dimension_semantics=("parallel",),
            vmem_limit_bytes=VMEM_LIMIT),
    )(z, vecs, w2, mask)


# ---------------------------------------------------------------------------
# Kernel C: outer BatchNorm (affine) + ReLU from GIN.forward.  Row-parallel.
# ---------------------------------------------------------------------------
def _bn_relu_kernel(h2_ref, vecs_ref, mask_ref, out_ref):
    scale = vecs_ref[0:1, :]
    shift = vecs_ref[1:2, :]
    out_ref[...] = jnp.maximum(h2_ref[...] * scale + shift, 0.0) * mask_ref[...]


def _bn_relu(h2, vecs, mask, *, n_pad, tm, h_pad):
    r = n_pad // tm
    grid_spec = pltpu.PrefetchScalarGridSpec(
        num_scalar_prefetch=0,
        grid=(r,),
        in_specs=[
            pl.BlockSpec((tm, h_pad), lambda i: (i, 0)),
            pl.BlockSpec((8, h_pad), lambda i: (0, 0)),
            pl.BlockSpec((tm, 1), lambda i: (i, 0)),
        ],
        out_specs=pl.BlockSpec((tm, h_pad), lambda i: (i, 0)),
    )
    return pl.pallas_call(
        _bn_relu_kernel,
        out_shape=jax.ShapeDtypeStruct((n_pad, h_pad), jnp.float32),
        grid_spec=grid_spec,
        compiler_params=pltpu.CompilerParams(
            dimension_semantics=("parallel",),
            vmem_limit_bytes=VMEM_LIMIT),
    )(h2, vecs, mask)


# ---------------------------------------------------------------------------
# Kernel D: fused global_add_pool + ALL per-layer classifier heads:
#   out = sum_i (P @ h_i) @ W_i  + sum_i b_i     (dropout p=0 -> identity)
# Single launch; P and each h_i are read exactly once, tiled over nodes.
# ---------------------------------------------------------------------------
def _make_pool_kernel(n_h):
    def kernel(*refs):
        p_ref = refs[0]
        h_refs = refs[1:1 + n_h]
        w_refs = refs[1 + n_h:1 + 2 * n_h]
        bsum_ref = refs[1 + 2 * n_h]
        out_ref = refs[2 + 2 * n_h]
        acc_ref = refs[3 + 2 * n_h]
        k = pl.program_id(0)

        @pl.when(k == 0)
        def _():
            acc_ref[...] = jnp.zeros_like(acc_ref)

        p = p_ref[...]
        acc = acc_ref[...]
        for h_ref, w_ref in zip(h_refs, w_refs):
            pooled = jnp.dot(p, h_ref[...], preferred_element_type=jnp.float32)
            acc = acc + jnp.dot(pooled, w_ref[...],
                                preferred_element_type=jnp.float32)
        acc_ref[...] = acc

        @pl.when(k == pl.num_programs(0) - 1)
        def _():
            out_ref[...] = acc_ref[...] + bsum_ref[...]

    return kernel


def _pool_heads(pool_mat, hs, ws, bsum, *, g_pad, c_pad, n_pad, tk):
    kt = n_pad // tk
    in_specs = [pl.BlockSpec((g_pad, tk), lambda k: (0, k))]
    for h in hs:
        d = h.shape[1]
        in_specs.append(pl.BlockSpec((tk, d), lambda k: (k, 0)))
    for w in ws:
        d0, d1 = w.shape
        in_specs.append(pl.BlockSpec((d0, d1), lambda k: (0, 0)))
    in_specs.append(pl.BlockSpec((1, c_pad), lambda k: (0, 0)))
    grid_spec = pltpu.PrefetchScalarGridSpec(
        num_scalar_prefetch=0,
        grid=(kt,),
        in_specs=in_specs,
        out_specs=pl.BlockSpec((g_pad, c_pad), lambda k: (0, 0)),
        scratch_shapes=[pltpu.VMEM((g_pad, c_pad), jnp.float32)],
    )
    return pl.pallas_call(
        _make_pool_kernel(len(hs)),
        out_shape=jax.ShapeDtypeStruct((g_pad, c_pad), jnp.float32),
        grid_spec=grid_spec,
        compiler_params=pltpu.CompilerParams(
            dimension_semantics=("arbitrary",),
            vmem_limit_bytes=VMEM_LIMIT),
    )(pool_mat, *hs, *ws, bsum)


# ---------------------------------------------------------------------------
# BatchNorm finalize (training-mode batch statistics, biased variance).
# ---------------------------------------------------------------------------
def _bn_affine(ssum, ssq, n_real, gamma, beta):
    inv_n = 1.0 / float(n_real)
    mean = ssum * inv_n
    var = jnp.maximum(ssq * inv_n - mean * mean, 0.0)
    scale = gamma * jax.lax.rsqrt(var + BN_EPS)
    shift = beta - mean * scale
    return scale, shift


def _gin_conv_layer(adj_bf, h, h_bf, mask, p, *, n, n_pad, tm, tk, in_pad,
                    h_pad, eps):
    z, stats1 = _conv_phase1(adj_bf, h_bf, h, mask, p["w1"], p["b1"],
                             n_pad=n_pad, tm=tm, tk=tk, f_pad=in_pad,
                             h_pad=h_pad, eps=eps)
    scale1, shift1 = _bn_affine(jnp.sum(stats1[:, 0, :], axis=0),
                                jnp.sum(stats1[:, 8, :], axis=0),
                                n, p["g1"], p["be1"])
    vecs1 = (jnp.zeros((8, h_pad), jnp.float32)
             .at[0].set(scale1).at[1].set(shift1).at[2].set(p["b2"][0]))
    h2, stats2 = _conv_phase2(z, vecs1, p["w2"], mask,
                              n_pad=n_pad, tm=tm, h_pad=h_pad)
    scale2, shift2 = _bn_affine(jnp.sum(stats2[:, 0, :], axis=0),
                                jnp.sum(stats2[:, 8, :], axis=0),
                                n, p["g2"], p["be2"])
    vecs2 = (jnp.zeros((8, h_pad), jnp.float32)
             .at[0].set(scale2).at[1].set(shift2))
    return _bn_relu(h2, vecs2, mask, n_pad=n_pad, tm=tm, h_pad=h_pad)


# ---------------------------------------------------------------------------
# Parameter construction (deterministic, shapes per GIN.__init__)
# ---------------------------------------------------------------------------
def init_params(key, num_features, num_classes, hidden_units, num_layers):
    def linear(k, fan_in, fan_out):
        kw, kb = jax.random.split(k)
        bound = 1.0 / (fan_in ** 0.5)
        w = jax.random.uniform(kw, (fan_in, fan_out), jnp.float32, -bound, bound)
        b = jax.random.uniform(kb, (1, fan_out), jnp.float32, -bound, bound)
        return w, b

    params = {"convs": [], "linears": []}
    keys = jax.random.split(key, 3 * num_layers)
    ki = 0
    params["linears"].append(linear(keys[ki], num_features, num_classes)); ki += 1
    for i in range(num_layers - 1):
        in_dim = num_features if i == 0 else hidden_units
        w1, b1 = linear(keys[ki], in_dim, hidden_units); ki += 1
        w2, b2 = linear(keys[ki], hidden_units, hidden_units); ki += 1
        params["convs"].append({
            "w1": w1, "b1": b1,
            "g1": jnp.ones((hidden_units,), jnp.float32),   # MLP-internal BN gamma
            "be1": jnp.zeros((hidden_units,), jnp.float32),
            "w2": w2, "b2": b2,
            "g2": jnp.ones((hidden_units,), jnp.float32),   # outer bns[i] gamma
            "be2": jnp.zeros((hidden_units,), jnp.float32),
        })
        params["linears"].append(linear(keys[ki], hidden_units, num_classes)); ki += 1
    return params


# ---------------------------------------------------------------------------
# Full GIN forward (layout/padding glue in JAX, hot paths in Pallas kernels)
# ---------------------------------------------------------------------------
def gin_forward(params, x, edge_index, batch, num_graphs, eps=0.0):
    n, f = x.shape
    hidden = params["convs"][0]["w1"].shape[1]
    n_classes = params["linears"][0][0].shape[1]

    f_pad = _round_up(f, LANE)
    h_pad = _round_up(hidden, LANE)
    c_pad = _round_up(n_classes, LANE)
    g_pad = _round_up(num_graphs, SUB)
    n_pad, tm, tk = _node_tiling(n)

    # Dense adjacency A[dst, src]; bf16 is exact for small integer degree counts.
    src, dst = edge_index[0], edge_index[1]
    adj = jnp.zeros((n_pad, n_pad), jnp.float32).at[dst, src].add(1.0)
    adj_bf = adj.astype(jnp.bfloat16)
    # TODO(synk): for large sparse graphs replace this dense O(N^2) adjacency with
    # scalar-prefetch-driven block-sparse tiles so only nonzero (tm, tk) tiles
    # are DMA'd and multiplied.

    mask = (jnp.arange(n_pad) < n).astype(jnp.float32)[:, None]      # (n_pad, 1)
    pool_mat = (batch[None, :] == jnp.arange(g_pad)[:, None]).astype(jnp.float32)
    pool_mat = jnp.zeros((g_pad, n_pad), jnp.float32).at[:, :n].set(pool_mat)

    h = jnp.zeros((n_pad, f_pad), jnp.float32).at[:n, :f].set(x)
    hs_padded = [h]
    in_pad = f_pad
    for conv in params["convs"]:
        conv_p = {
            "w1": _pad2(conv["w1"], (in_pad, h_pad)),
            "b1": _pad2(conv["b1"], (1, h_pad)),
            "w2": _pad2(conv["w2"], (h_pad, h_pad)),
            "b2": _pad2(conv["b2"], (1, h_pad)),
            "g1": _pad1(conv["g1"], h_pad), "be1": _pad1(conv["be1"], h_pad),
            "g2": _pad1(conv["g2"], h_pad), "be2": _pad1(conv["be2"], h_pad),
        }
        h = _gin_conv_layer(adj_bf, h, h.astype(jnp.bfloat16), mask, conv_p,
                            n=n, n_pad=n_pad, tm=tm, tk=tk, in_pad=in_pad,
                            h_pad=h_pad, eps=eps)
        hs_padded.append(h)
        in_pad = h_pad

    # Fused global_add_pool + per-layer classifier heads (single pallas_call).
    ws, bs = [], []
    for i, (w, b) in enumerate(params["linears"]):
        d = f_pad if i == 0 else h_pad
        ws.append(_pad2(w, (d, c_pad)))
        bs.append(_pad2(b, (1, c_pad)))
    bsum = jnp.sum(jnp.stack(bs, axis=0), axis=0)    # dropout p=0 -> identity
    out = _pool_heads(pool_mat, hs_padded, ws, bsum, g_pad=g_pad, c_pad=c_pad,
                      n_pad=n_pad, tk=tk)[:num_graphs, :n_classes]

    h_list = [hs_padded[0][:n, :f]] + [hp[:n, :hidden] for hp in hs_padded[1:]]
    return h_list, out


if __name__ == "__main__":
    NUM_FEATURES = 16
    NUM_CLASSES = 8
    HIDDEN = 32
    NUM_LAYERS = 3
    N_NODES = 16
    N_GRAPHS = 2

    key = jax.random.PRNGKey(0)
    kx, kp = jax.random.split(key)

    # Node features
    x = jax.random.normal(kx, (N_NODES, NUM_FEATURES), jnp.float32)

    # Two graphs of 8 nodes each; each graph an undirected ring -> 32 directed edges
    edges = []
    for g in range(N_GRAPHS):
        base = g * 8
        for v in range(8):
            a, b = base + v, base + (v + 1) % 8
            edges.append((a, b))
            edges.append((b, a))
    edge_index = jnp.array(edges, dtype=jnp.int32).T            # [2, 32]
    batch = jnp.repeat(jnp.arange(N_GRAPHS, dtype=jnp.int32), 8)  # [16]

    params = init_params(kp, NUM_FEATURES, NUM_CLASSES, HIDDEN, NUM_LAYERS)

    fwd = jax.jit(functools.partial(gin_forward, num_graphs=N_GRAPHS))
    h_list, out = fwd(params, x, edge_index, batch)
    out = jax.block_until_ready(out)
    h_list = [jax.block_until_ready(h) for h in h_list]

    assert h_list[0].shape == (N_NODES, NUM_FEATURES)
    assert h_list[1].shape == (N_NODES, HIDDEN)
    assert h_list[2].shape == (N_NODES, HIDDEN)
    assert out.shape == (N_GRAPHS, NUM_CLASSES)
    assert all(bool(jnp.all(jnp.isfinite(h))) for h in h_list)
    assert bool(jnp.all(jnp.isfinite(out)))

    print("KERNEL_OK")
</pallas_src>

<mosaic_0001>
module attributes {stable_mosaic.version = 11 : i64} {
  func.func private @main(%arg0: i32) attributes {dimension_semantics = [#tpu.dimension_semantics<core_parallel>], iteration_bounds = array<i64: 2>, tpu.core_type = #tpu.core_type<sc_scalar_subcore>, window_params = []} {
    return
  }
}

module attributes {stable_mosaic.version = 11 : i64} {
  func.func private @main(%arg0: i32) attributes {dimension_semantics = [#tpu.dimension_semantics<core_parallel>], iteration_bounds = array<i64: 2>, tpu.core_type = #tpu.core_type<sc_scalar_subcore>, window_params = []} {
    return
  }
}

module attributes {stable_mosaic.version = 11 : i64} {
  func.func @_bn_relu_kernel(%arg0: i32, %arg1: memref<128x128xf32, #tpu.memory_space<vmem>>, %arg2: memref<8x128xf32, #tpu.memory_space<vmem>>, %arg3: memref<128x1xf32, #tpu.memory_space<vmem>>, %arg4: memref<128x128xf32, #tpu.memory_space<vmem>>) attributes {dimension_semantics = [#tpu.dimension_semantics<parallel>], iteration_bounds = array<i64: 1>, scalar_prefetch = 0 : i64, scratch_operands = 0 : i64, tpu.core_type = #tpu.core_type<tc>, window_params = [{transform_indices = @transform_0, window_bounds = array<i64: 128, 128>}, {pipeline_mode = #tpu.pipeline_mode<synchronous>, transform_indices = @transform_1, window_bounds = array<i64: 8, 128>}, {transform_indices = @transform_2, window_bounds = array<i64: 128, 1>}, {transform_indices = @transform_3, window_bounds = array<i64: 128, 128>}]} {
    %c0 = arith.constant 0 : index
    %c0_0 = arith.constant 0 : index
    %0 = vector.load %arg2[%c0, %c0_0] : memref<8x128xf32, #tpu.memory_space<vmem>>, vector<1x128xf32>
    %c1 = arith.constant 1 : index
    %c0_1 = arith.constant 0 : index
    %1 = vector.load %arg2[%c1, %c0_1] : memref<8x128xf32, #tpu.memory_space<vmem>>, vector<1x128xf32>
    %c0_2 = arith.constant 0 : index
    %c0_3 = arith.constant 0 : index
    %2 = vector.load %arg1[%c0_2, %c0_3] : memref<128x128xf32, #tpu.memory_space<vmem>>, vector<128x128xf32>
    %3 = vector.broadcast %0 : vector<1x128xf32> to vector<128x128xf32>
    %4 = arith.mulf %2, %3 : vector<128x128xf32>
    %5 = vector.broadcast %1 : vector<1x128xf32> to vector<128x128xf32>
    %6 = arith.addf %4, %5 : vector<128x128xf32>
    %cst = arith.constant 0.000000e+00 : f32
    %7 = vector.broadcast %cst : f32 to vector<128x128xf32>
    %8 = arith.maximumf %6, %7 : vector<128x128xf32>
    %c0_4 = arith.constant 0 : index
    %c0_5 = arith.constant 0 : index
    %9 = vector.load %arg3[%c0_4, %c0_5] : memref<128x1xf32, #tpu.memory_space<vmem>>, vector<128x1xf32>
    %10 = vector.broadcast %9 : vector<128x1xf32> to vector<128x128xf32>
    %11 = arith.mulf %8, %10 : vector<128x128xf32>
    %c0_6 = arith.constant 0 : index
    %c0_7 = arith.constant 0 : index
    %12 = vector.load %arg4[%c0_6, %c0_7] : memref<128x128xf32, #tpu.memory_space<vmem>>, vector<128x128xf32>
    tpu.vector_store %arg4[%c0_6, %c0_7], %11 {strides = array<i32>} : memref<128x128xf32, #tpu.memory_space<vmem>>, vector<128x128xf32>,
    return
  }
  func.func @transform_0(%arg0: i32) -> (i32, i32) {
    %c0_i32 = arith.constant 0 : i32
    %c0_i32_0 = arith.constant 0 : i32
    return %arg0, %c0_i32 : i32, i32
  }
  func.func @transform_1(%arg0: i32) -> (i32, i32) {
    %c0_i32 = arith.constant 0 : i32
    %c0_i32_0 = arith.constant 0 : i32
    %c0_i32_1 = arith.constant 0 : i32
    return %c0_i32, %c0_i32_0 : i32, i32
  }
  func.func @transform_2(%arg0: i32) -> (i32, i32) {
    %c0_i32 = arith.constant 0 : i32
    %c0_i32_0 = arith.constant 0 : i32
    return %arg0, %c0_i32 : i32, i32
  }
  func.func @transform_3(%arg0: i32) -> (i32, i32) {
    %c0_i32 = arith.constant 0 : i32
    %c0_i32_0 = arith.constant 0 : i32
    return %arg0, %c0_i32 : i32, i32
  }
}

module attributes {stable_mosaic.version = 11 : i64} {
  func.func @_conv_phase1_kernel(%arg0: i32, %arg1: i32, %arg2: memref<128x128xbf16, #tpu.memory_space<vmem>>, %arg3: memref<128x128xbf16, #tpu.memory_space<vmem>>, %arg4: memref<128x128xf32, #tpu.memory_space<vmem>>, %arg5: memref<128x1xf32, #tpu.memory_space<vmem>>, %arg6: memref<128x128xf32, #tpu.memory_space<vmem>>, %arg7: memref<1x128xf32, #tpu.memory_space<vmem>>, %arg8: memref<128x128xf32, #tpu.memory_space<vmem>>, %arg9: memref<1x16x128xf32, #tpu.memory_space<vmem>>, %arg10: memref<128x128xf32, #tpu.memory_space<vmem>>) attributes {dimension_semantics = [#tpu.dimension_semantics<parallel>, #tpu.dimension_semantics<arbitrary>], iteration_bounds = array<i64: 1, 1>, scalar_prefetch = 0 : i64, scratch_operands = 1 : i64, tpu.core_type = #tpu.core_type<tc>, window_params = [{transform_indices = @transform_0, window_bounds = array<i64: 128, 128>}, {transform_indices = @transform_1, window_bounds = array<i64: 128, 128>}, {transform_indices = @transform_2, window_bounds = array<i64: 128, 128>}, {transform_indices = @transform_3, window_bounds = array<i64: 128, 1>}, {pipeline_mode = #tpu.pipeline_mode<synchronous>, transform_indices = @transform_4, window_bounds = array<i64: 128, 128>}, {pipeline_mode = #tpu.pipeline_mode<synchronous>, transform_indices = @transform_5, window_bounds = array<i64: 1, 128>}, {transform_indices = @transform_6, window_bounds = array<i64: 128, 128>}, {transform_indices = @transform_7, window_bounds = array<i64: 1, 16, 128>}]} {
    %c0_i32 = arith.constant 0 : i32
    %0 = arith.cmpi eq, %arg1, %c0_i32 : i32
    %1 = arith.extui %0 : i1 to i32
    %c0_i32_0 = arith.constant 0 : i32
    %2 = arith.cmpi ne, %1, %c0_i32_0 : i32
    scf.if %2 {
      %cst_10 = arith.constant 0.000000e+00 : f32
      %12 = vector.broadcast %cst_10 : f32 to vector<128x128xf32>
      %c0_11 = arith.constant 0 : index
      %c0_12 = arith.constant 0 : index
      %13 = vector.load %arg10[%c0_11, %c0_12] : memref<128x128xf32, #tpu.memory_space<vmem>>, vector<128x128xf32>
      tpu.vector_store %arg10[%c0_11, %c0_12], %12 {strides = array<i32>} : memref<128x128xf32, #tpu.memory_space<vmem>>, vector<128x128xf32>,
    } else {
    }
    %c0 = arith.constant 0 : index
    %c0_1 = arith.constant 0 : index
    %3 = vector.load %arg10[%c0, %c0_1] : memref<128x128xf32, #tpu.memory_space<vmem>>, vector<128x128xf32>
    %c0_2 = arith.constant 0 : index
    %c0_3 = arith.constant 0 : index
    %4 = vector.load %arg2[%c0_2, %c0_3] : memref<128x128xbf16, #tpu.memory_space<vmem>>, vector<128x128xbf16>
    %c0_4 = arith.constant 0 : index
    %c0_5 = arith.constant 0 : index
    %5 = vector.load %arg3[%c0_4, %c0_5] : memref<128x128xbf16, #tpu.memory_space<vmem>>, vector<128x128xbf16>
    %cst = arith.constant dense<0.000000e+00> : vector<128x128xf32>
    %6 = tpu.matmul %4, %5, %cst {dimension_numbers = #tpu.dot_dimension_numbers<[1], [0], [0], [1], [0, 0, 1, 1], [], []>} : vector<128x128xbf16>, vector<128x128xbf16>, vector<128x128xf32> -> vector<128x128xf32>
    %7 = arith.addf %3, %6 : vector<128x128xf32>
    %c0_6 = arith.constant 0 : index
    %c0_7 = arith.constant 0 : index
    %8 = vector.load %arg10[%c0_6, %c0_7] : memref<128x128xf32, #tpu.memory_space<vmem>>, vector<128x128xf32>
    tpu.vector_store %arg10[%c0_6, %c0_7], %7 {strides = array<i32>} : memref<128x128xf32, #tpu.memory_space<vmem>>, vector<128x128xf32>,
    %c0_i32_8 = arith.constant 0 : i32
    %9 = arith.cmpi eq, %arg1, %c0_i32_8 : i32
    %10 = arith.extui %9 : i1 to i32
    %c0_i32_9 = arith.constant 0 : i32
    %11 = arith.cmpi ne, %10, %c0_i32_9 : i32
    scf.if %11 {
      %c0_10 = arith.constant 0 : index
      %c0_11 = arith.constant 0 : index
      %12 = vector.load %arg10[%c0_10, %c0_11] : memref<128x128xf32, #tpu.memory_space<vmem>>, vector<128x128xf32>
      %c0_12 = arith.constant 0 : index
      %c0_13 = arith.constant 0 : index
      %13 = vector.load %arg4[%c0_12, %c0_13] : memref<128x128xf32, #tpu.memory_space<vmem>>, vector<128x128xf32>
      %cst_14 = arith.constant 1.000000e+00 : f32
      %14 = vector.broadcast %cst_14 : f32 to vector<128x128xf32>
      %15 = arith.mulf %14, %13 : vector<128x128xf32>
      %16 = arith.addf %12, %15 : vector<128x128xf32>
      %c0_15 = arith.constant 0 : index
      %c0_16 = arith.constant 0 : index
      %17 = vector.load %arg6[%c0_15, %c0_16] : memref<128x128xf32, #tpu.memory_space<vmem>>, vector<128x128xf32>
      %cst_17 = arith.constant dense<0.000000e+00> : vector<128x128xf32>
      %18 = tpu.matmul %16, %17, %cst_17 {dimension_numbers = #tpu.dot_dimension_numbers<[1], [0], [0], [1], [0, 0, 1, 1], [], []>} : vector<128x128xf32>, vector<128x128xf32>, vector<128x128xf32> -> vector<128x128xf32>
      %c0_18 = arith.constant 0 : index
      %c0_19 = arith.constant 0 : index
      %19 = vector.load %arg7[%c0_18, %c0_19] : memref<1x128xf32, #tpu.memory_space<vmem>>, vector<1x128xf32>
      %20 = vector.broadcast %19 : vector<1x128xf32> to vector<128x128xf32>
      %21 = arith.addf %18, %20 : vector<128x128xf32>
      %c0_20 = arith.constant 0 : index
      %c0_21 = arith.constant 0 : index
      %22 = vector.load %arg5[%c0_20, %c0_21] : memref<128x1xf32, #tpu.memory_space<vmem>>, vector<128x1xf32>
      %23 = vector.broadcast %22 : vector<128x1xf32> to vector<128x128xf32>
      %24 = arith.mulf %21, %23 : vector<128x128xf32>
      %c0_22 = arith.constant 0 : index
      %c0_23 = arith.constant 0 : index
      %25 = vector.load %arg8[%c0_22, %c0_23] : memref<128x128xf32, #tpu.memory_space<vmem>>, vector<128x128xf32>
      tpu.vector_store %arg8[%c0_22, %c0_23], %24 {strides = array<i32>} : memref<128x128xf32, #tpu.memory_space<vmem>>, vector<128x128xf32>,
      %cst_24 = arith.constant dense<0.000000e+00> : vector<128xf32>
      %26 = vector.multi_reduction <add>, %24, %cst_24 [0] : vector<128x128xf32> to vector<128xf32>
      %27 = vector.shape_cast %26 : vector<128xf32> to vector<1x128xf32>
      %28 = arith.mulf %24, %24 : vector<128x128xf32>
      %cst_25 = arith.constant dense<0.000000e+00> : vector<128xf32>
      %29 = vector.multi_reduction <add>, %28, %cst_25 [0] : vector<128x128xf32> to vector<128xf32>
      %30 = vector.shape_cast %29 : vector<128xf32> to vector<1x128xf32>
      %31 = vector.shape_cast %27 : vector<1x128xf32> to vector<1x128xf32>
      %32 = vector.broadcast %31 : vector<1x128xf32> to vector<8x128xf32>
      %c0_26 = arith.constant 0 : index
      %c0_27 = arith.constant 0 : index
      %c0_28 = arith.constant 0 : index
      %33 = vector.load %arg9[%c0_26, %c0_27, %c0_28] : memref<1x16x128xf32, #tpu.memory_space<vmem>>, vector<1x8x128xf32>
      %34 = vector.shape_cast %33 : vector<1x8x128xf32> to vector<8x128xf32>
      %35 = vector.shape_cast %32 : vector<8x128xf32> to vector<1x8x128xf32>
      tpu.vector_store %arg9[%c0_26, %c0_27, %c0_28], %35 {strides = array<i32>} : memref<1x16x128xf32, #tpu.memory_space<vmem>>, vector<1x8x128xf32>,
      %36 = vector.shape_cast %30 : vector<1x128xf32> to vector<1x128xf32>
      %37 = vector.broadcast %36 : vector<1x128xf32> to vector<8x128xf32>
      %c0_29 = arith.constant 0 : index
      %c8 = arith.constant 8 : index
      %c0_30 = arith.constant 0 : index
      %38 = vector.load %arg9[%c0_29, %c8, %c0_30] : memref<1x16x128xf32, #tpu.memory_space<vmem>>, vector<1x8x128xf32>
      %39 = vector.shape_cast %38 : vector<1x8x128xf32> to vector<8x128xf32>
      %40 = vector.shape_cast %37 : vector<8x128xf32> to vector<1x8x128xf32>
      tpu.vector_store %arg9[%c0_29, %c8, %c0_30], %40 {strides = array<i32>} : memref<1x16x128xf32, #tpu.memory_space<vmem>>, vector<1x8x128xf32>,
    } else {
    }
    return
  }
  func.func @transform_0(%arg0: i32, %arg1: i32) -> (i32, i32) {
    %c0_i32 = arith.constant 0 : i32
    return %arg0, %arg1 : i32, i32
  }
  func.func @transform_1(%arg0: i32, %arg1: i32) -> (i32, i32) {
    %c0_i32 = arith.constant 0 : i32
    %c0_i32_0 = arith.constant 0 : i32
    return %arg1, %c0_i32 : i32, i32
  }
  func.func @transform_2(%arg0: i32, %arg1: i32) -> (i32, i32) {
    %c0_i32 = arith.constant 0 : i32
    %c0_i32_0 = arith.constant 0 : i32
    return %arg0, %c0_i32 : i32, i32
  }
  func.func @transform_3(%arg0: i32, %arg1: i32) -> (i32, i32) {
    %c0_i32 = arith.constant 0 : i32
    %c0_i32_0 = arith.constant 0 : i32
    return %arg0, %c0_i32 : i32, i32
  }
  func.func @transform_4(%arg0: i32, %arg1: i32) -> (i32, i32) {
    %c0_i32 = arith.constant 0 : i32
    %c0_i32_0 = arith.constant 0 : i32
    %c0_i32_1 = arith.constant 0 : i32
    return %c0_i32, %c0_i32_0 : i32, i32
  }
  func.func @transform_5(%arg0: i32, %arg1: i32) -> (i32, i32) {
    %c0_i32 = arith.constant 0 : i32
    %c0_i32_0 = arith.constant 0 : i32
    %c0_i32_1 = arith.constant 0 : i32
    return %c0_i32, %c0_i32_0 : i32, i32
  }
  func.func @transform_6(%arg0: i32, %arg1: i32) -> (i32, i32) {
    %c0_i32 = arith.constant 0 : i32
    %c0_i32_0 = arith.constant 0 : i32
    return %arg0, %c0_i32 : i32, i32
  }
  func.func @transform_7(%arg0: i32, %arg1: i32) -> (i32, i32, i32) {
    %c0_i32 = arith.constant 0 : i32
    %c0_i32_0 = arith.constant 0 : i32
    %c0_i32_1 = arith.constant 0 : i32
    return %arg0, %c0_i32, %c0_i32_0 : i32, i32, i32
  }
}

module attributes {stable_mosaic.version = 11 : i64} {
  func.func @_conv_phase2_kernel(%arg0: i32, %arg1: memref<128x128xf32, #tpu.memory_space<vmem>>, %arg2: memref<8x128xf32, #tpu.memory_space<vmem>>, %arg3: memref<128x128xf32, #tpu.memory_space<vmem>>, %arg4: memref<128x1xf32, #tpu.memory_space<vmem>>, %arg5: memref<128x128xf32, #tpu.memory_space<vmem>>, %arg6: memref<1x16x128xf32, #tpu.memory_space<vmem>>) attributes {dimension_semantics = [#tpu.dimension_semantics<parallel>], iteration_bounds = array<i64: 1>, scalar_prefetch = 0 : i64, scratch_operands = 0 : i64, tpu.core_type = #tpu.core_type<tc>, window_params = [{transform_indices = @transform_0, window_bounds = array<i64: 128, 128>}, {pipeline_mode = #tpu.pipeline_mode<synchronous>, transform_indices = @transform_1, window_bounds = array<i64: 8, 128>}, {pipeline_mode = #tpu.pipeline_mode<synchronous>, transform_indices = @transform_2, window_bounds = array<i64: 128, 128>}, {transform_indices = @transform_3, window_bounds = array<i64: 128, 1>}, {transform_indices = @transform_4, window_bounds = array<i64: 128, 128>}, {transform_indices = @transform_5, window_bounds = array<i64: 1, 16, 128>}]} {
    %c0 = arith.constant 0 : index
    %c0_0 = arith.constant 0 : index
    %0 = vector.load %arg2[%c0, %c0_0] : memref<8x128xf32, #tpu.memory_space<vmem>>, vector<1x128xf32>
    %c1 = arith.constant 1 : index
    %c0_1 = arith.constant 0 : index
    %1 = vector.load %arg2[%c1, %c0_1] : memref<8x128xf32, #tpu.memory_space<vmem>>, vector<1x128xf32>
    %c2 = arith.constant 2 : index
    %c0_2 = arith.constant 0 : index
    %2 = vector.load %arg2[%c2, %c0_2] : memref<8x128xf32, #tpu.memory_space<vmem>>, vector<1x128xf32>
    %c0_3 = arith.constant 0 : index
    %c0_4 = arith.constant 0 : index
    %3 = vector.load %arg1[%c0_3, %c0_4] : memref<128x128xf32, #tpu.memory_space<vmem>>, vector<128x128xf32>
    %4 = vector.broadcast %0 : vector<1x128xf32> to vector<128x128xf32>
    %5 = arith.mulf %3, %4 : vector<128x128xf32>
    %6 = vector.broadcast %1 : vector<1x128xf32> to vector<128x128xf32>
    %7 = arith.addf %5, %6 : vector<128x128xf32>
    %cst = arith.constant 0.000000e+00 : f32
    %8 = vector.broadcast %cst : f32 to vector<128x128xf32>
    %9 = arith.maximumf %7, %8 : vector<128x128xf32>
    %c0_5 = arith.constant 0 : index
    %c0_6 = arith.constant 0 : index
    %10 = vector.load %arg3[%c0_5, %c0_6] : memref<128x128xf32, #tpu.memory_space<vmem>>, vector<128x128xf32>
    %cst_7 = arith.constant dense<0.000000e+00> : vector<128x128xf32>
    %11 = tpu.matmul %9, %10, %cst_7 {dimension_numbers = #tpu.dot_dimension_numbers<[1], [0], [0], [1], [0, 0, 1, 1], [], []>} : vector<128x128xf32>, vector<128x128xf32>, vector<128x128xf32> -> vector<128x128xf32>
    %12 = vector.broadcast %2 : vector<1x128xf32> to vector<128x128xf32>
    %13 = arith.addf %11, %12 : vector<128x128xf32>
    %c0_8 = arith.constant 0 : index
    %c0_9 = arith.constant 0 : index
    %14 = vector.load %arg4[%c0_8, %c0_9] : memref<128x1xf32, #tpu.memory_space<vmem>>, vector<128x1xf32>
    %15 = vector.broadcast %14 : vector<128x1xf32> to vector<128x128xf32>
    %16 = arith.mulf %13, %15 : vector<128x128xf32>
    %c0_10 = arith.constant 0 : index
    %c0_11 = arith.constant 0 : index
    %17 = vector.load %arg5[%c0_10, %c0_11] : memref<128x128xf32, #tpu.memory_space<vmem>>, vector<128x128xf32>
    tpu.vector_store %arg5[%c0_10, %c0_11], %16 {strides = array<i32>} : memref<128x128xf32, #tpu.memory_space<vmem>>, vector<128x128xf32>,
    %cst_12 = arith.constant dense<0.000000e+00> : vector<128xf32>
    %18 = vector.multi_reduction <add>, %16, %cst_12 [0] : vector<128x128xf32> to vector<128xf32>
    %19 = vector.shape_cast %18 : vector<128xf32> to vector<1x128xf32>
    %20 = arith.mulf %16, %16 : vector<128x128xf32>
    %cst_13 = arith.constant dense<0.000000e+00> : vector<128xf32>
    %21 = vector.multi_reduction <add>, %20, %cst_13 [0] : vector<128x128xf32> to vector<128xf32>
    %22 = vector.shape_cast %21 : vector<128xf32> to vector<1x128xf32>
    %23 = vector.shape_cast %19 : vector<1x128xf32> to vector<1x128xf32>
    %24 = vector.broadcast %23 : vector<1x128xf32> to vector<8x128xf32>
    %c0_14 = arith.constant 0 : index
    %c0_15 = arith.constant 0 : index
    %c0_16 = arith.constant 0 : index
    %25 = vector.load %arg6[%c0_14, %c0_15, %c0_16] : memref<1x16x128xf32, #tpu.memory_space<vmem>>, vector<1x8x128xf32>
    %26 = vector.shape_cast %25 : vector<1x8x128xf32> to vector<8x128xf32>
    %27 = vector.shape_cast %24 : vector<8x128xf32> to vector<1x8x128xf32>
    tpu.vector_store %arg6[%c0_14, %c0_15, %c0_16], %27 {strides = array<i32>} : memref<1x16x128xf32, #tpu.memory_space<vmem>>, vector<1x8x128xf32>,
    %28 = vector.shape_cast %22 : vector<1x128xf32> to vector<1x128xf32>
    %29 = vector.broadcast %28 : vector<1x128xf32> to vector<8x128xf32>
    %c0_17 = arith.constant 0 : index
    %c8 = arith.constant 8 : index
    %c0_18 = arith.constant 0 : index
    %30 = vector.load %arg6[%c0_17, %c8, %c0_18] : memref<1x16x128xf32, #tpu.memory_space<vmem>>, vector<1x8x128xf32>
    %31 = vector.shape_cast %30 : vector<1x8x128xf32> to vector<8x128xf32>
    %32 = vector.shape_cast %29 : vector<8x128xf32> to vector<1x8x128xf32>
    tpu.vector_store %arg6[%c0_17, %c8, %c0_18], %32 {strides = array<i32>} : memref<1x16x128xf32, #tpu.memory_space<vmem>>, vector<1x8x128xf32>,
    return
  }
  func.func @transform_0(%arg0: i32) -> (i32, i32) {
    %c0_i32 = arith.constant 0 : i32
    %c0_i32_0 = arith.constant 0 : i32
    return %arg0, %c0_i32 : i32, i32
  }
  func.func @transform_1(%arg0: i32) -> (i32, i32) {
    %c0_i32 = arith.constant 0 : i32
    %c0_i32_0 = arith.constant 0 : i32
    %c0_i32_1 = arith.constant 0 : i32
    return %c0_i32, %c0_i32_0 : i32, i32
  }
  func.func @transform_2(%arg0: i32) -> (i32, i32) {
    %c0_i32 = arith.constant 0 : i32
    %c0_i32_0 = arith.constant 0 : i32
    %c0_i32_1 = arith.constant 0 : i32
    return %c0_i32, %c0_i32_0 : i32, i32
  }
  func.func @transform_3(%arg0: i32) -> (i32, i32) {
    %c0_i32 = arith.constant 0 : i32
    %c0_i32_0 = arith.constant 0 : i32
    return %arg0, %c0_i32 : i32, i32
  }
  func.func @transform_4(%arg0: i32) -> (i32, i32) {
    %c0_i32 = arith.constant 0 : i32
    %c0_i32_0 = arith.constant 0 : i32
    return %arg0, %c0_i32 : i32, i32
  }
  func.func @transform_5(%arg0: i32) -> (i32, i32, i32) {
    %c0_i32 = arith.constant 0 : i32
    %c0_i32_0 = arith.constant 0 : i32
    %c0_i32_1 = arith.constant 0 : i32
    return %arg0, %c0_i32, %c0_i32_0 : i32, i32, i32
  }
}

module attributes {stable_mosaic.version = 11 : i64} {
  func.func @kernel(%arg0: i32, %arg1: memref<8x128xf32, #tpu.memory_space<vmem>>, %arg2: memref<128x128xf32, #tpu.memory_space<vmem>>, %arg3: memref<128x128xf32, #tpu.memory_space<vmem>>, %arg4: memref<128x128xf32, #tpu.memory_space<vmem>>, %arg5: memref<128x128xf32, #tpu.memory_space<vmem>>, %arg6: memref<128x128xf32, #tpu.memory_space<vmem>>, %arg7: memref<128x128xf32, #tpu.memory_space<vmem>>, %arg8: memref<1x128xf32, #tpu.memory_space<vmem>>, %arg9: memref<8x128xf32, #tpu.memory_space<vmem>>, %arg10: memref<8x128xf32, #tpu.memory_space<vmem>>) attributes {dimension_semantics = [#tpu.dimension_semantics<arbitrary>], iteration_bounds = array<i64: 1>, scalar_prefetch = 0 : i64, scratch_operands = 1 : i64, tpu.core_type = #tpu.core_type<tc>, window_params = [{transform_indices = @transform_0, window_bounds = array<i64: 8, 128>}, {transform_indices = @transform_1, window_bounds = array<i64: 128, 128>}, {transform_indices = @transform_2, window_bounds = array<i64: 128, 128>}, {transform_indices = @transform_3, window_bounds = array<i64: 128, 128>}, {pipeline_mode = #tpu.pipeline_mode<synchronous>, transform_indices = @transform_4, window_bounds = array<i64: 128, 128>}, {pipeline_mode = #tpu.pipeline_mode<synchronous>, transform_indices = @transform_5, window_bounds = array<i64: 128, 128>}, {pipeline_mode = #tpu.pipeline_mode<synchronous>, transform_indices = @transform_6, window_bounds = array<i64: 128, 128>}, {pipeline_mode = #tpu.pipeline_mode<synchronous>, transform_indices = @transform_7, window_bounds = array<i64: 1, 128>}, {pipeline_mode = #tpu.pipeline_mode<synchronous>, transform_indices = @transform_8, window_bounds = array<i64: 8, 128>}]} {
    %c0_i32 = arith.constant 0 : i32
    %0 = arith.cmpi eq, %arg0, %c0_i32 : i32
    %1 = arith.extui %0 : i1 to i32
    %c0_i32_0 = arith.constant 0 : i32
    %2 = arith.cmpi ne, %1, %c0_i32_0 : i32
    scf.if %2 {
      %cst_25 = arith.constant 0.000000e+00 : f32
      %24 = vector.broadcast %cst_25 : f32 to vector<8x128xf32>
      %c0_26 = arith.constant 0 : index
      %c0_27 = arith.constant 0 : index
      %25 = vector.load %arg10[%c0_26, %c0_27] : memref<8x128xf32, #tpu.memory_space<vmem>>, vector<8x128xf32>
      tpu.vector_store %arg10[%c0_26, %c0_27], %24 {strides = array<i32>} : memref<8x128xf32, #tpu.memory_space<vmem>>, vector<8x128xf32>,
    } else {
    }
    %c0 = arith.constant 0 : index
    %c0_1 = arith.constant 0 : index
    %3 = vector.load %arg1[%c0, %c0_1] : memref<8x128xf32, #tpu.memory_space<vmem>>, vector<8x128xf32>
    %c0_2 = arith.constant 0 : index
    %c0_3 = arith.constant 0 : index
    %4 = vector.load %arg10[%c0_2, %c0_3] : memref<8x128xf32, #tpu.memory_space<vmem>>, vector<8x128xf32>
    %c0_4 = arith.constant 0 : index
    %c0_5 = arith.constant 0 : index
    %5 = vector.load %arg2[%c0_4, %c0_5] : memref<128x128xf32, #tpu.memory_space<vmem>>, vector<128x128xf32>
    %cst = arith.constant dense<0.000000e+00> : vector<8x128xf32>
    %6 = tpu.matmul %3, %5, %cst {dimension_numbers = #tpu.dot_dimension_numbers<[1], [0], [0], [1], [0, 0, 1, 1], [], []>} : vector<8x128xf32>, vector<128x128xf32>, vector<8x128xf32> -> vector<8x128xf32>
    %c0_6 = arith.constant 0 : index
    %c0_7 = arith.constant 0 : index
    %7 = vector.load %arg5[%c0_6, %c0_7] : memref<128x128xf32, #tpu.memory_space<vmem>>, vector<128x128xf32>
    %cst_8 = arith.constant dense<0.000000e+00> : vector<8x128xf32>
    %8 = tpu.matmul %6, %7, %cst_8 {dimension_numbers = #tpu.dot_dimension_numbers<[1], [0], [0], [1], [0, 0, 1, 1], [], []>} : vector<8x128xf32>, vector<128x128xf32>, vector<8x128xf32> -> vector<8x128xf32>
    %9 = arith.addf %4, %8 : vector<8x128xf32>
    %c0_9 = arith.constant 0 : index
    %c0_10 = arith.constant 0 : index
    %10 = vector.load %arg3[%c0_9, %c0_10] : memref<128x128xf32, #tpu.memory_space<vmem>>, vector<128x128xf32>
    %cst_11 = arith.constant dense<0.000000e+00> : vector<8x128xf32>
    %11 = tpu.matmul %3, %10, %cst_11 {dimension_numbers = #tpu.dot_dimension_numbers<[1], [0], [0], [1], [0, 0, 1, 1], [], []>} : vector<8x128xf32>, vector<128x128xf32>, vector<8x128xf32> -> vector<8x128xf32>
    %c0_12 = arith.constant 0 : index
    %c0_13 = arith.constant 0 : index
    %12 = vector.load %arg6[%c0_12, %c0_13] : memref<128x128xf32, #tpu.memory_space<vmem>>, vector<128x128xf32>
    %cst_14 = arith.constant dense<0.000000e+00> : vector<8x128xf32>
    %13 = tpu.matmul %11, %12, %cst_14 {dimension_numbers = #tpu.dot_dimension_numbers<[1], [0], [0], [1], [0, 0, 1, 1], [], []>} : vector<8x128xf32>, vector<128x128xf32>, vector<8x128xf32> -> vector<8x128xf32>
    %14 = arith.addf %9, %13 : vector<8x128xf32>
    %c0_15 = arith.constant 0 : index
    %c0_16 = arith.constant 0 : index
    %15 = vector.load %arg4[%c0_15, %c0_16] : memref<128x128xf32, #tpu.memory_space<vmem>>, vector<128x128xf32>
    %cst_17 = arith.constant dense<0.000000e+00> : vector<8x128xf32>
    %16 = tpu.matmul %3, %15, %cst_17 {dimension_numbers = #tpu.dot_dimension_numbers<[1], [0], [0], [1], [0, 0, 1, 1], [], []>} : vector<8x128xf32>, vector<128x128xf32>, vector<8x128xf32> -> vector<8x128xf32>
    %c0_18 = arith.constant 0 : index
    %c0_19 = arith.constant 0 : index
    %17 = vector.load %arg7[%c0_18, %c0_19] : memref<128x128xf32, #tpu.memory_space<vmem>>, vector<128x128xf32>
    %cst_20 = arith.constant dense<0.000000e+00> : vector<8x128xf32>
    %18 = tpu.matmul %16, %17, %cst_20 {dimension_numbers = #tpu.dot_dimension_numbers<[1], [0], [0], [1], [0, 0, 1, 1], [], []>} : vector<8x128xf32>, vector<128x128xf32>, vector<8x128xf32> -> vector<8x128xf32>
    %19 = arith.addf %14, %18 : vector<8x128xf32>
    %c0_21 = arith.constant 0 : index
    %c0_22 = arith.constant 0 : index
    %20 = vector.load %arg10[%c0_21, %c0_22] : memref<8x128xf32, #tpu.memory_space<vmem>>, vector<8x128xf32>
    tpu.vector_store %arg10[%c0_21, %c0_22], %19 {strides = array<i32>} : memref<8x128xf32, #tpu.memory_space<vmem>>, vector<8x128xf32>,
    %c0_i32_23 = arith.constant 0 : i32
    %21 = arith.cmpi eq, %arg0, %c0_i32_23 : i32
    %22 = arith.extui %21 : i1 to i32
    %c0_i32_24 = arith.constant 0 : i32
    %23 = arith.cmpi ne, %22, %c0_i32_24 : i32
    scf.if %23 {
      %c0_25 = arith.constant 0 : index
      %c0_26 = arith.constant 0 : index
      %24 = vector.load %arg10[%c0_25, %c0_26] : memref<8x128xf32, #tpu.memory_space<vmem>>, vector<8x128xf32>
      %c0_27 = arith.constant 0 : index
      %c0_28 = arith.constant 0 : index
      %25 = vector.load %arg8[%c0_27, %c0_28] : memref<1x128xf32, #tpu.memory_space<vmem>>, vector<1x128xf32>
      %26 = vector.broadcast %25 : vector<1x128xf32> to vector<8x128xf32>
      %27 = arith.addf %24, %26 : vector<8x128xf32>
      %c0_29 = arith.constant 0 : index
      %c0_30 = arith.constant 0 : index
      %28 = vector.load %arg9[%c0_29, %c0_30] : memref<8x128xf32, #tpu.memory_space<vmem>>, vector<8x128xf32>
      tpu.vector_store %arg9[%c0_29, %c0_30], %27 {strides = array<i32>} : memref<8x128xf32, #tpu.memory_space<vmem>>, vector<8x128xf32>,
    } else {
    }
    return
  }
  func.func @transform_0(%arg0: i32) -> (i32, i32) {
    %c0_i32 = arith.constant 0 : i32
    %c0_i32_0 = arith.constant 0 : i32
    return %c0_i32, %arg0 : i32, i32
  }
  func.func @transform_1(%arg0: i32) -> (i32, i32) {
    %c0_i32 = arith.constant 0 : i32
    %c0_i32_0 = arith.constant 0 : i32
    return %arg0, %c0_i32 : i32, i32
  }
  func.func @transform_2(%arg0: i32) -> (i32, i32) {
    %c0_i32 = arith.constant 0 : i32
    %c0_i32_0 = arith.constant 0 : i32
    return %arg0, %c0_i32 : i32, i32
  }
  func.func @transform_3(%arg0: i32) -> (i32, i32) {
    %c0_i32 = arith.constant 0 : i32
    %c0_i32_0 = arith.constant 0 : i32
    return %arg0, %c0_i32 : i32, i32
  }
  func.func @transform_4(%arg0: i32) -> (i32, i32) {
    %c0_i32 = arith.constant 0 : i32
    %c0_i32_0 = arith.constant 0 : i32
    %c0_i32_1 = arith.constant 0 : i32
    return %c0_i32, %c0_i32_0 : i32, i32
  }
  func.func @transform_5(%arg0: i32) -> (i32, i32) {
    %c0_i32 = arith.constant 0 : i32
    %c0_i32_0 = arith.constant 0 : i32
    %c0_i32_1 = arith.constant 0 : i32
    return %c0_i32, %c0_i32_0 : i32, i32
  }
  func.func @transform_6(%arg0: i32) -> (i32, i32) {
    %c0_i32 = arith.constant 0 : i32
    %c0_i32_0 = arith.constant 0 : i32
    %c0_i32_1 = arith.constant 0 : i32
    return %c0_i32, %c0_i32_0 : i32, i32
  }
  func.func @transform_7(%arg0: i32) -> (i32, i32) {
    %c0_i32 = arith.constant 0 : i32
    %c0_i32_0 = arith.constant 0 : i32
    %c0_i32_1 = arith.constant 0 : i32
    return %c0_i32, %c0_i32_0 : i32, i32
  }
  func.func @transform_8(%arg0: i32) -> (i32, i32) {
    %c0_i32 = arith.constant 0 : i32
    %c0_i32_0 = arith.constant 0 : i32
    %c0_i32_1 = arith.constant 0 : i32
    return %c0_i32, %c0_i32_0 : i32, i32
  }
}

</mosaic_0001>

<llo_original>
// kernel: gin_forward.9
$region0: #{gin_forward.9}
  #allocation0 [shape = 'u32[]', space=smem, size = 0x4, offset = 0x4, fixed_abs, tag = 'smem constant byte address 0x4 - core index']
  #allocation1 [shape = 'u32[144,128]{1,0:T(1,128)}', space=vmem, size = 0x12000, scoped, tag = 'internal scratch']
  %s0 = inlined_call_operand.vmem [shape: f32[128,128], index: 0, kind: input, shape index: {}]
  %s1 = inlined_call_operand.vmem [shape: f32[8,128], index: 1, kind: input, shape index: {}]
  %s2 = inlined_call_operand.vmem [shape: f32[128,1], index: 2, kind: input, shape index: {}]
  %s3 = inlined_call_operand.vmem [shape: f32[128,128], index: 3, kind: output, shape index: {}]
  %s4 = sld [smem:[#allocation0]]
  $region22: #{gin_forward.9} parent=0
    _
  %s6 = ssub.s32 1, %s4
  %s7 = scalar_select 0, %s6, %s4
  // Predicated region
  $region2: #{gin_forward.9} parent=0 // pred_check
    _
  $region3: #{gin_forward.9} parent=0 // pred_check_branch
    %9 = sbr.rel (0) target = $region5
  $region4: #{gin_forward.9} parent=0 // pred_region
    _
  $region5: #{gin_forward.9} parent=0 // pred_fallthru
    _
  // Predicated region
  $region6: #{gin_forward.9} parent=0 // pred_check
    _
  $region7: #{gin_forward.9} parent=0 // pred_check_branch
    %11 = sbr.rel (0) target = $region9
  $region8: #{gin_forward.9} parent=0 // pred_region
    _
  $region9: #{gin_forward.9} parent=0 // pred_fallthru
    _
  // Predicated region
  $region10: #{gin_forward.9} parent=0 // pred_check
    _
  $region11: #{gin_forward.9} parent=0 // pred_check_branch
    %13 = sbr.rel (0) target = $region13
  $region12: #{gin_forward.9} parent=0 // pred_region
    _
  $region13: #{gin_forward.9} parent=0 // pred_fallthru
    _
  %v14 = vld [vmem:[%s1] sm:$0x1]
  %v15 = vld [vmem:[%s1 + $0x1] sm:$0x1]
  %v16 = vld [vmem:[%s0] sm:$0xff]
  %v17 = vld [vmem:[%s0 + $0x8] sm:$0xff]
  %v18 = vld [vmem:[%s0 + $0x10] sm:$0xff]
  %v19 = vld [vmem:[%s0 + $0x18] sm:$0xff]
  %v20 = vld [vmem:[%s0 + $0x20] sm:$0xff]
  %v21 = vld [vmem:[%s0 + $0x28] sm:$0xff]
  %v22 = vld [vmem:[%s0 + $0x30] sm:$0xff]
  %v23 = vld [vmem:[%s0 + $0x38] sm:$0xff]
  %v24 = vld [vmem:[%s0 + $0x40] sm:$0xff]
  %v25 = vld [vmem:[%s0 + $0x48] sm:$0xff]
  %v26 = vld [vmem:[%s0 + $0x50] sm:$0xff]
  %v27 = vld [vmem:[%s0 + $0x58] sm:$0xff]
  %v28 = vld [vmem:[%s0 + $0x60] sm:$0xff]
  %v29 = vld [vmem:[%s0 + $0x68] sm:$0xff]
  %v30 = vld [vmem:[%s0 + $0x70] sm:$0xff]
  %v31 = vld [vmem:[%s0 + $0x78] sm:$0xff]
  %v32 = vlaneseq
  %v33 = vshrl.u32 %v32, 7
  %v34 = vsub.s32 0, %v33
  %v35 = vrot.slane %v14, %v34
  %v36 = vmul.f32 %v16, %v35
  %v37 = vmul.f32 %v17, %v35
  %v38 = vmul.f32 %v18, %v35
  %v39 = vmul.f32 %v19, %v35
  %v40 = vmul.f32 %v20, %v35
  %v41 = vmul.f32 %v21, %v35
  %v42 = vmul.f32 %v22, %v35
  %v43 = vmul.f32 %v23, %v35
  %v44 = vmul.f32 %v24, %v35
  %v45 = vmul.f32 %v25, %v35
  %v46 = vmul.f32 %v26, %v35
  %v47 = vmul.f32 %v27, %v35
  %v48 = vmul.f32 %v28, %v35
  %v49 = vmul.f32 %v29, %v35
  %v50 = vmul.f32 %v30, %v35
  %v51 = vmul.f32 %v31, %v35
  %v52 = vlaneseq
  %v53 = vshrl.u32 %v52, 7
  %v54 = vsub.s32 0, %v53
  %v55 = vrot.slane %v15, %v54
  %v56 = vadd.f32 %v36, %v55
  %v57 = vadd.f32 %v37, %v55
  %v58 = vadd.f32 %v38, %v55
  %v59 = vadd.f32 %v39, %v55
  %v60 = vadd.f32 %v40, %v55
  %v61 = vadd.f32 %v41, %v55
  %v62 = vadd.f32 %v42, %v55
  %v63 = vadd.f32 %v43, %v55
  %v64 = vadd.f32 %v44, %v55
  %v65 = vadd.f32 %v45, %v55
  %v66 = vadd.f32 %v46, %v55
  %v67 = vadd.f32 %v47, %v55
  %v68 = vadd.f32 %v48, %v55
  %v69 = vadd.f32 %v49, %v55
  %v70 = vadd.f32 %v50, %v55
  %v71 = vadd.f32 %v51, %v55
  %v72 = vmax.f32 %v56, 0.0
  %v73 = vmax.f32 %v57, 0.0
  %v74 = vmax.f32 %v58, 0.0
  %v75 = vmax.f32 %v59, 0.0
  %v76 = vmax.f32 %v60, 0.0
  %v77 = vmax.f32 %v61, 0.0
  %v78 = vmax.f32 %v62, 0.0
  %v79 = vmax.f32 %v63, 0.0
  %v80 = vmax.f32 %v64, 0.0
  %v81 = vmax.f32 %v65, 0.0
  %v82 = vmax.f32 %v66, 0.0
  %v83 = vmax.f32 %v67, 0.0
  %v84 = vmax.f32 %v68, 0.0
  %v85 = vmax.f32 %v69, 0.0
  %v86 = vmax.f32 %v70, 0.0
  %v87 = vmax.f32 %v71, 0.0
  %v88 = vld [vmem:[%s2] sm:$0xff]
  %v89 = vld [vmem:[%s2 + $0x8] sm:$0xff]
  %v90 = vld [vmem:[%s2 + $0x10] sm:$0xff]
  %v91 = vld [vmem:[%s2 + $0x18] sm:$0xff]
  %v92 = vld [vmem:[%s2 + $0x20] sm:$0xff]
  %v93 = vld [vmem:[%s2 + $0x28] sm:$0xff]
  %v94 = vld [vmem:[%s2 + $0x30] sm:$0xff]
  %v95 = vld [vmem:[%s2 + $0x38] sm:$0xff]
  %v96 = vld [vmem:[%s2 + $0x40] sm:$0xff]
  %v97 = vld [vmem:[%s2 + $0x48] sm:$0xff]
  %v98 = vld [vmem:[%s2 + $0x50] sm:$0xff]
  %v99 = vld [vmem:[%s2 + $0x58] sm:$0xff]
  %v100 = vld [vmem:[%s2 + $0x60] sm:$0xff]
  %v101 = vld [vmem:[%s2 + $0x68] sm:$0xff]
  %v102 = vld [vmem:[%s2 + $0x70] sm:$0xff]
  %v103 = vld [vmem:[%s2 + $0x78] sm:$0xff]
  %105 = vset.pattern.permute.xlu0 0
  %106 = vperm.xlu0 %105, %v88
  %v107 = vpop.permute.xlu0 %106
  %110 = vset.pattern.permute.xlu0 0
  %111 = vperm.xlu0 %110, %v89
  %v112 = vpop.permute.xlu0 %111
  %115 = vset.pattern.permute.xlu0 0
  %116 = vperm.xlu0 %115, %v90
  %v117 = vpop.permute.xlu0 %116
  %120 = vset.pattern.permute.xlu0 0
  %121 = vperm.xlu0 %120, %v91
  %v122 = vpop.permute.xlu0 %121
  %125 = vset.pattern.permute.xlu0 0
  %126 = vperm.xlu0 %125, %v92
  %v127 = vpop.permute.xlu0 %126
  %130 = vset.pattern.permute.xlu0 0
  %131 = vperm.xlu0 %130, %v93
  %v132 = vpop.permute.xlu0 %131
  %135 = vset.pattern.permute.xlu0 0
  %136 = vperm.xlu0 %135, %v94
  %v137 = vpop.permute.xlu0 %136
  %140 = vset.pattern.permute.xlu0 0
  %141 = vperm.xlu0 %140, %v95
  %v142 = vpop.permute.xlu0 %141
  %145 = vset.pattern.permute.xlu0 0
  %146 = vperm.xlu0 %145, %v96
  %v147 = vpop.permute.xlu0 %146
  %150 = vset.pattern.permute.xlu0 0
  %151 = vperm.xlu0 %150, %v97
  %v152 = vpop.permute.xlu0 %151
  %155 = vset.pattern.permute.xlu0 0
  %156 = vperm.xlu0 %155, %v98
  %v157 = vpop.permute.xlu0 %156
  %160 = vset.pattern.permute.xlu0 0
  %161 = vperm.xlu0 %160, %v99
  %v162 = vpop.permute.xlu0 %161
  %165 = vset.pattern.permute.xlu0 0
  %166 = vperm.xlu0 %165, %v100
  %v167 = vpop.permute.xlu0 %166
  %170 = vset.pattern.permute.xlu0 0
  %171 = vperm.xlu0 %170, %v101
  %v172 = vpop.permute.xlu0 %171
  %175 = vset.pattern.permute.xlu0 0
  %176 = vperm.xlu0 %175, %v102
  %v177 = vpop.permute.xlu0 %176
  %180 = vset.pattern.permute.xlu0 0
  %181 = vperm.xlu0 %180, %v103
  %v182 = vpop.permute.xlu0 %181
  %v184 = vmul.f32 %v72, %v107
  %v185 = vmul.f32 %v73, %v112
  %v186 = vmul.f32 %v74, %v117
  %v187 = vmul.f32 %v75, %v122
  %v188 = vmul.f32 %v76, %v127
  %v189 = vmul.f32 %v77, %v132
  %v190 = vmul.f32 %v78, %v137
  %v191 = vmul.f32 %v79, %v142
  %v192 = vmul.f32 %v80, %v147
  %v193 = vmul.f32 %v81, %v152
  %v194 = vmul.f32 %v82, %v157
  %v195 = vmul.f32 %v83, %v162
  %v196 = vmul.f32 %v84, %v167
  %v197 = vmul.f32 %v85, %v172
  %v198 = vmul.f32 %v86, %v177
  %v199 = vmul.f32 %v87, %v182
  %200 = vst [vmem:[%s3] sm:$0xff] %v184
  %201 = vst [vmem:[%s3 + $0x8] sm:$0xff] %v185
  %202 = vst [vmem:[%s3 + $0x10] sm:$0xff] %v186
  %203 = vst [vmem:[%s3 + $0x18] sm:$0xff] %v187
  %204 = vst [vmem:[%s3 + $0x20] sm:$0xff] %v188
  %205 = vst [vmem:[%s3 + $0x28] sm:$0xff] %v189
  %206 = vst [vmem:[%s3 + $0x30] sm:$0xff] %v190
  %207 = vst [vmem:[%s3 + $0x38] sm:$0xff] %v191
  %208 = vst [vmem:[%s3 + $0x40] sm:$0xff] %v192
  %209 = vst [vmem:[%s3 + $0x48] sm:$0xff] %v193
  %210 = vst [vmem:[%s3 + $0x50] sm:$0xff] %v194
  %211 = vst [vmem:[%s3 + $0x58] sm:$0xff] %v195
  %212 = vst [vmem:[%s3 + $0x60] sm:$0xff] %v196
  %213 = vst [vmem:[%s3 + $0x68] sm:$0xff] %v197
  %214 = vst [vmem:[%s3 + $0x70] sm:$0xff] %v198
  %215 = vst [vmem:[%s3 + $0x78] sm:$0xff] %v199
  // Predicated region
  $region14: #{gin_forward.9} parent=0 // pred_check
    _
  $region15: #{gin_forward.9} parent=0 // pred_check_branch
    %217 = sbr.rel (0) target = $region17
  $region16: #{gin_forward.9} parent=0 // pred_region
    _
  $region17: #{gin_forward.9} parent=0 // pred_fallthru
    _
  // Predicated region
  $region18: #{gin_forward.9} parent=0 // pred_check
    _
  $region19: #{gin_forward.9} parent=0 // pred_check_branch
    %219 = sbr.rel (0) target = $region21
  $region20: #{gin_forward.9} parent=0 // pred_region
    _
  $region21: #{gin_forward.9} parent=0 // pred_fallthru
    _

// kernel: gin_forward.8
$region0: #{gin_forward.8}
  #allocation0 [shape = 'u32[]', space=smem, size = 0x4, offset = 0x4, fixed_abs, tag = 'smem constant byte address 0x4 - core index']
  #allocation1 [shape = 'u32[144,128]{1,0:T(1,128)}', space=vmem, size = 0x12000, scoped, tag = 'internal scratch']
  %s0 = inlined_call_operand.vmem [shape: f32[128,128], index: 0, kind: input, shape index: {}]
  %s1 = inlined_call_operand.vmem [shape: f32[8,128], index: 1, kind: input, shape index: {}]
  %s2 = inlined_call_operand.vmem [shape: f32[128,128], index: 2, kind: input, shape index: {}]
  %s3 = inlined_call_operand.vmem [shape: f32[128,1], index: 3, kind: input, shape index: {}]
  %s4 = inlined_call_operand.vmem [shape: f32[128,128], index: 4, kind: output, shape index: {0}]
  %s5 = inlined_call_operand.vmem [shape: f32[1,16,128], index: 5, kind: output, shape index: {1}]
  %6 = xla_tuple %s4, %s5
  %s7 = sld [smem:[#allocation0]]
  $region34: #{gin_forward.8} parent=0
    _
  %s9 = ssub.s32 1, %s7
  %s10 = scalar_select 0, %s9, %s7
  // Predicated region
  $region2: #{gin_forward.8} parent=0 // pred_check
    _
  $region3: #{gin_forward.8} parent=0 // pred_check_branch
    %12 = sbr.rel (0) target = $region5
  $region4: #{gin_forward.8} parent=0 // pred_region
    _
  $region5: #{gin_forward.8} parent=0 // pred_fallthru
    _
  // Predicated region
  $region6: #{gin_forward.8} parent=0 // pred_check
    _
  $region7: #{gin_forward.8} parent=0 // pred_check_branch
    %14 = sbr.rel (0) target = $region9
  $region8: #{gin_forward.8} parent=0 // pred_region
    _
  $region9: #{gin_forward.8} parent=0 // pred_fallthru
    _
  // Predicated region
  $region10: #{gin_forward.8} parent=0 // pred_check
    _
  $region11: #{gin_forward.8} parent=0 // pred_check_branch
    %16 = sbr.rel (0) target = $region13
  $region12: #{gin_forward.8} parent=0 // pred_region
    _
  $region13: #{gin_forward.8} parent=0 // pred_fallthru
    _
  // Predicated region
  $region14: #{gin_forward.8} parent=0 // pred_check
    _
  $region15: #{gin_forward.8} parent=0 // pred_check_branch
    %18 = sbr.rel (0) target = $region17
  $region16: #{gin_forward.8} parent=0 // pred_region
    _
  $region17: #{gin_forward.8} parent=0 // pred_fallthru
    _
  %v19 = vld [vmem:[%s1] sm:$0x1]
  %v20 = vld [vmem:[%s1 + $0x1] sm:$0x1]
  %v21 = vld [vmem:[%s1 + $0x2] sm:$0x1]
  %v22 = vld [vmem:[%s0] sm:$0xff]
  %v23 = vld [vmem:[%s0 + $0x8] sm:$0xff]
  %v24 = vld [vmem:[%s0 + $0x10] sm:$0xff]
  %v25 = vld [vmem:[%s0 + $0x18] sm:$0xff]
  %v26 = vld [vmem:[%s0 + $0x20] sm:$0xff]
  %v27 = vld [vmem:[%s0 + $0x28] sm:$0xff]
  %v28 = vld [vmem:[%s0 + $0x30] sm:$0xff]
  %v29 = vld [vmem:[%s0 + $0x38] sm:$0xff]
  %v30 = vld [vmem:[%s0 + $0x40] sm:$0xff]
  %v31 = vld [vmem:[%s0 + $0x48] sm:$0xff]
  %v32 = vld [vmem:[%s0 + $0x50] sm:$0xff]
  %v33 = vld [vmem:[%s0 + $0x58] sm:$0xff]
  %v34 = vld [vmem:[%s0 + $0x60] sm:$0xff]
  %v35 = vld [vmem:[%s0 + $0x68] sm:$0xff]
  %v36 = vld [vmem:[%s0 + $0x70] sm:$0xff]
  %v37 = vld [vmem:[%s0 + $0x78] sm:$0xff]
  %v38 = vlaneseq
  %v39 = vshrl.u32 %v38, 7
  %v40 = vsub.s32 0, %v39
  %v41 = vrot.slane %v19, %v40
  %v42 = vmul.f32 %v22, %v41
  %v43 = vmul.f32 %v23, %v41
  %v44 = vmul.f32 %v24, %v41
  %v45 = vmul.f32 %v25, %v41
  %v46 = vmul.f32 %v26, %v41
  %v47 = vmul.f32 %v27, %v41
  %v48 = vmul.f32 %v28, %v41
  %v49 = vmul.f32 %v29, %v41
  %v50 = vmul.f32 %v30, %v41
  %v51 = vmul.f32 %v31, %v41
  %v52 = vmul.f32 %v32, %v41
  %v53 = vmul.f32 %v33, %v41
  %v54 = vmul.f32 %v34, %v41
  %v55 = vmul.f32 %v35, %v41
  %v56 = vmul.f32 %v36, %v41
  %v57 = vmul.f32 %v37, %v41
  %v58 = vlaneseq
  %v59 = vshrl.u32 %v58, 7
  %v60 = vsub.s32 0, %v59
  %v61 = vrot.slane %v20, %v60
  %v62 = vadd.f32 %v42, %v61
  %v63 = vadd.f32 %v43, %v61
  %v64 = vadd.f32 %v44, %v61
  %v65 = vadd.f32 %v45, %v61
  %v66 = vadd.f32 %v46, %v61
  %v67 = vadd.f32 %v47, %v61
  %v68 = vadd.f32 %v48, %v61
  %v69 = vadd.f32 %v49, %v61
  %v70 = vadd.f32 %v50, %v61
  %v71 = vadd.f32 %v51, %v61
  %v72 = vadd.f32 %v52, %v61
  %v73 = vadd.f32 %v53, %v61
  %v74 = vadd.f32 %v54, %v61
  %v75 = vadd.f32 %v55, %v61
  %v76 = vadd.f32 %v56, %v61
  %v77 = vadd.f32 %v57, %v61
  %v78 = vmax.f32 %v62, 0.0
  %v79 = vmax.f32 %v63, 0.0
  %v80 = vmax.f32 %v64, 0.0
  %v81 = vmax.f32 %v65, 0.0
  %v82 = vmax.f32 %v66, 0.0
  %v83 = vmax.f32 %v67, 0.0
  %v84 = vmax.f32 %v68, 0.0
  %v85 = vmax.f32 %v69, 0.0
  %v86 = vmax.f32 %v70, 0.0
  %v87 = vmax.f32 %v71, 0.0
  %v88 = vmax.f32 %v72, 0.0
  %v89 = vmax.f32 %v73, 0.0
  %v90 = vmax.f32 %v74, 0.0
  %v91 = vmax.f32 %v75, 0.0
  %v92 = vmax.f32 %v76, 0.0
  %v93 = vmax.f32 %v77, 0.0
  %v94 = vld [vmem:[%s2] sm:$0xff]
  %v95 = vld [vmem:[%s2 + $0x8] sm:$0xff]
  %v96 = vld [vmem:[%s2 + $0x10] sm:$0xff]
  %v97 = vld [vmem:[%s2 + $0x18] sm:$0xff]
  %v98 = vld [vmem:[%s2 + $0x20] sm:$0xff]
  %v99 = vld [vmem:[%s2 + $0x28] sm:$0xff]
  %v100 = vld [vmem:[%s2 + $0x30] sm:$0xff]
  %v101 = vld [vmem:[%s2 + $0x38] sm:$0xff]
  %v102 = vld [vmem:[%s2 + $0x40] sm:$0xff]
  %v103 = vld [vmem:[%s2 + $0x48] sm:$0xff]
  %v104 = vld [vmem:[%s2 + $0x50] sm:$0xff]
  %v105 = vld [vmem:[%s2 + $0x58] sm:$0xff]
  %v106 = vld [vmem:[%s2 + $0x60] sm:$0xff]
  %v107 = vld [vmem:[%s2 + $0x68] sm:$0xff]
  %v108 = vld [vmem:[%s2 + $0x70] sm:$0xff]
  %v109 = vld [vmem:[%s2 + $0x78] sm:$0xff]
  %v110 = vlaneseq
  %v111 = vshrl.u32 %v110, 7
  %v112 = vsub.s32 0, %v111
  %v113 = vrot.slane %v21, %v112
  %114 = vmatprep.subr.mxu0 0.0
  %115 = vmatpush1.msra.mxu0 %v94
  %116 = vmatprep.subr.mxu0 0.0
  %117 = vmatpush1.msra.mxu0 %v95
  %118 = vmatprep.subr.mxu0 0.0
  %119 = vmatpush1.msra.mxu0 %v96
  %120 = vmatprep.subr.mxu0 0.0
  %121 = vmatpush1.msra.mxu0 %v97
  %122 = vmatprep.subr.mxu0 0.0
  %123 = vmatpush1.msra.mxu0 %v98
  %124 = vmatprep.subr.mxu0 0.0
  %125 = vmatpush1.msra.mxu0 %v99
  %126 = vmatprep.subr.mxu0 0.0
  %127 = vmatpush1.msra.mxu0 %v100
  %128 = vmatprep.subr.mxu0 0.0
  %129 = vmatpush1.msra.mxu0 %v101
  %130 = vmatprep.subr.mxu0 0.0
  %131 = vmatpush1.msra.mxu0 %v102
  %132 = vmatprep.subr.mxu0 0.0
  %133 = vmatpush1.msra.mxu0 %v103
  %134 = vmatprep.subr.mxu0 0.0
  %135 = vmatpush1.msra.mxu0 %v104
  %136 = vmatprep.subr.mxu0 0.0
  %137 = vmatpush1.msra.mxu0 %v105
  %138 = vmatprep.subr.mxu0 0.0
  %139 = vmatpush1.msra.mxu0 %v106
  %140 = vmatprep.subr.mxu0 0.0
  %141 = vmatpush1.msra.mxu0 %v107
  %142 = vmatprep.subr.mxu0 0.0
  %143 = vmatpush1.msra.mxu0 %v108
  %144 = vmatprep.subr.mxu0 0.0
  %145 = vmatpush1.msra.mxu0 %v109
  %146 = vmatprep.subr.mxu0 0.0
  %147 = vmatpush1.msra.mxu0 0.0
  %148 = vmatprep.subr.mxu0 0.0
  %149 = vmatpush1.msra.mxu0 0.0
  %150 = vmatprep.subr.mxu0 0.0
  %151 = vmatpush1.msra.mxu0 0.0
  %152 = vmatprep.subr.mxu0 0.0
  %153 = vmatpush1.msra.mxu0 0.0
  %154 = vmatprep.subr.mxu0 0.0
  %155 = vmatpush1.msra.mxu0 0.0
  %156 = vmatprep.subr.mxu0 0.0
  %157 = vmatpush1.msra.mxu0 0.0
  %158 = vmatprep.subr.mxu0 0.0
  %159 = vmatpush1.msra.mxu0 0.0
  %160 = vmatprep.subr.mxu0 0.0
  %161 = vmatpush1.msra.mxu0 0.0
  %162 = vmatprep.subr.mxu0 0.0
  %163 = vmatpush1.msra.mxu0 0.0
  %164 = vmatprep.subr.mxu0 0.0
  %165 = vmatpush1.msra.mxu0 0.0
  %166 = vmatprep.subr.mxu0 0.0
  %167 = vmatpush1.msra.mxu0 0.0
  %168 = vmatprep.subr.mxu0 0.0
  %169 = vmatpush1.msra.mxu0 0.0
  %170 = vmatprep.subr.mxu0 0.0
  %171 = vmatpush1.msra.mxu0 0.0
  %172 = vmatprep.subr.mxu0 0.0
  %173 = vmatpush1.msra.mxu0 0.0
  %174 = vmatprep.subr.mxu0 0.0
  %175 = vmatpush1.msra.mxu0 0.0
  %176 = vmatprep.subr.mxu0 0.0
  %177 = vmatpush1.msra.mxu0 0.0
  %178 = vmatprep.mubr.f32.mxu0 0.0
  %179 = vmatmul.mubr.f32.gmra.mrb[0].mxu0 %v78
  %v180 = vpop.f32.mrb[0].mxu0
  %v181 = vadd.f32 %v113, %v180
  %v182 = vpop.f32.mrb[0].mxu0
  %183 = vmatprep.mubr.f32.mxu0 0.0
  %184 = vmatmul.mubr.f32.gmra.mrb[0].mxu0 %v79
  %v185 = vpop.f32.mrb[0].mxu0
  %v186 = vadd.f32 %v113, %v185
  %v187 = vpop.f32.mrb[0].mxu0
  %188 = vmatprep.mubr.f32.mxu0 0.0
  %189 = vmatmul.mubr.f32.gmra.mrb[0].mxu0 %v80
  %v190 = vpop.f32.mrb[0].mxu0
  %v191 = vadd.f32 %v113, %v190
  %v192 = vpop.f32.mrb[0].mxu0
  %193 = vmatprep.mubr.f32.mxu0 0.0
  %194 = vmatmul.mubr.f32.gmra.mrb[0].mxu0 %v81
  %v195 = vpop.f32.mrb[0].mxu0
  %v196 = vadd.f32 %v113, %v195
  %v197 = vpop.f32.mrb[0].mxu0
  %198 = vmatprep.mubr.f32.mxu0 0.0
  %199 = vmatmul.mubr.f32.gmra.mrb[0].mxu0 %v82
  %v200 = vpop.f32.mrb[0].mxu0
  %v201 = vadd.f32 %v113, %v200
  %v202 = vpop.f32.mrb[0].mxu0
  %203 = vmatprep.mubr.f32.mxu0 0.0
  %204 = vmatmul.mubr.f32.gmra.mrb[0].mxu0 %v83
  %v205 = vpop.f32.mrb[0].mxu0
  %v206 = vadd.f32 %v113, %v205
  %v207 = vpop.f32.mrb[0].mxu0
  %208 = vmatprep.mubr.f32.mxu0 0.0
  %209 = vmatmul.mubr.f32.gmra.mrb[0].mxu0 %v84
  %v210 = vpop.f32.mrb[0].mxu0
  %v211 = vadd.f32 %v113, %v210
  %v212 = vpop.f32.mrb[0].mxu0
  %213 = vmatprep.mubr.f32.mxu0 0.0
  %214 = vmatmul.mubr.f32.gmra.mrb[0].mxu0 %v85
  %v215 = vpop.f32.mrb[0].mxu0
  %v216 = vadd.f32 %v113, %v215
  %v217 = vpop.f32.mrb[0].mxu0
  %218 = vmatprep.mubr.f32.mxu0 0.0
  %219 = vmatmul.mubr.f32.gmra.mrb[0].mxu0 %v86
  %v220 = vpop.f32.mrb[0].mxu0
  %v221 = vadd.f32 %v113, %v220
  %v222 = vpop.f32.mrb[0].mxu0
  %223 = vmatprep.mubr.f32.mxu0 0.0
  %224 = vmatmul.mubr.f32.gmra.mrb[0].mxu0 %v87
  %v225 = vpop.f32.mrb[0].mxu0
  %v226 = vadd.f32 %v113, %v225
  %v227 = vpop.f32.mrb[0].mxu0
  %228 = vmatprep.mubr.f32.mxu0 0.0
  %229 = vmatmul.mubr.f32.gmra.mrb[0].mxu0 %v88
  %v230 = vpop.f32.mrb[0].mxu0
  %v231 = vadd.f32 %v113, %v230
  %v232 = vpop.f32.mrb[0].mxu0
  %233 = vmatprep.mubr.f32.mxu0 0.0
  %234 = vmatmul.mubr.f32.gmra.mrb[0].mxu0 %v89
  %v235 = vpop.f32.mrb[0].mxu0
  %v236 = vadd.f32 %v113, %v235
  %v237 = vpop.f32.mrb[0].mxu0
  %238 = vmatprep.mubr.f32.mxu0 0.0
  %239 = vmatmul.mubr.f32.gmra.mrb[0].mxu0 %v90
  %v240 = vpop.f32.mrb[0].mxu0
  %v241 = vadd.f32 %v113, %v240
  %v242 = vpop.f32.mrb[0].mxu0
  %243 = vmatprep.mubr.f32.mxu0 0.0
  %244 = vmatmul.mubr.f32.gmra.mrb[0].mxu0 %v91
  %v245 = vpop.f32.mrb[0].mxu0
  %v246 = vadd.f32 %v113, %v245
  %v247 = vpop.f32.mrb[0].mxu0
  %248 = vmatprep.mubr.f32.mxu0 0.0
  %249 = vmatmul.mubr.f32.gmra.mrb[0].mxu0 %v92
  %v250 = vpop.f32.mrb[0].mxu0
  %v251 = vadd.f32 %v113, %v250
  %v252 = vpop.f32.mrb[0].mxu0
  %253 = vmatprep.mubr.f32.mxu0 0.0
  %254 = vmatmul.mubr.f32.gmra.mrb[0].mxu0 %v93
  %v255 = vpop.f32.mrb[0].mxu0
  %v256 = vadd.f32 %v113, %v255
  %v257 = vpop.f32.mrb[0].mxu0
  %258 = vdwg.mxu0
  %v259 = vld [vmem:[%s3] sm:$0xff]
  %v260 = vld [vmem:[%s3 + $0x8] sm:$0xff]
  %v261 = vld [vmem:[%s3 + $0x10] sm:$0xff]
  %v262 = vld [vmem:[%s3 + $0x18] sm:$0xff]
  %v263 = vld [vmem:[%s3 + $0x20] sm:$0xff]
  %v264 = vld [vmem:[%s3 + $0x28] sm:$0xff]
  %v265 = vld [vmem:[%s3 + $0x30] sm:$0xff]
  %v266 = vld [vmem:[%s3 + $0x38] sm:$0xff]
  %v267 = vld [vmem:[%s3 + $0x40] sm:$0xff]
  %v268 = vld [vmem:[%s3 + $0x48] sm:$0xff]
  %v269 = vld [vmem:[%s3 + $0x50] sm:$0xff]
  %v270 = vld [vmem:[%s3 + $0x58] sm:$0xff]
  %v271 = vld [vmem:[%s3 + $0x60] sm:$0xff]
  %v272 = vld [vmem:[%s3 + $0x68] sm:$0xff]
  %v273 = vld [vmem:[%s3 + $0x70] sm:$0xff]
  %v274 = vld [vmem:[%s3 + $0x78] sm:$0xff]
  %276 = vset.pattern.permute.xlu0 0
  %277 = vperm.xlu0 %276, %v259
  %v278 = vpop.permute.xlu0 %277
  %281 = vset.pattern.permute.xlu0 0
  %282 = vperm.xlu0 %281, %v260
  %v283 = vpop.permute.xlu0 %282
  %286 = vset.pattern.permute.xlu0 0
  %287 = vperm.xlu0 %286, %v261
  %v288 = vpop.permute.xlu0 %287
  %291 = vset.pattern.permute.xlu0 0
  %292 = vperm.xlu0 %291, %v262
  %v293 = vpop.permute.xlu0 %292
  %296 = vset.pattern.permute.xlu0 0
  %297 = vperm.xlu0 %296, %v263
  %v298 = vpop.permute.xlu0 %297
  %301 = vset.pattern.permute.xlu0 0
  %302 = vperm.xlu0 %301, %v264
  %v303 = vpop.permute.xlu0 %302
  %306 = vset.pattern.permute.xlu0 0
  %307 = vperm.xlu0 %306, %v265
  %v308 = vpop.permute.xlu0 %307
  %311 = vset.pattern.permute.xlu0 0
  %312 = vperm.xlu0 %311, %v266
  %v313 = vpop.permute.xlu0 %312
  %316 = vset.pattern.permute.xlu0 0
  %317 = vperm.xlu0 %316, %v267
  %v318 = vpop.permute.xlu0 %317
  %321 = vset.pattern.permute.xlu0 0
  %322 = vperm.xlu0 %321, %v268
  %v323 = vpop.permute.xlu0 %322
  %326 = vset.pattern.permute.xlu0 0
  %327 = vperm.xlu0 %326, %v269
  %v328 = vpop.permute.xlu0 %327
  %331 = vset.pattern.permute.xlu0 0
  %332 = vperm.xlu0 %331, %v270
  %v333 = vpop.permute.xlu0 %332
  %336 = vset.pattern.permute.xlu0 0
  %337 = vperm.xlu0 %336, %v271
  %v338 = vpop.permute.xlu0 %337
  %341 = vset.pattern.permute.xlu0 0
  %342 = vperm.xlu0 %341, %v272
  %v343 = vpop.permute.xlu0 %342
  %346 = vset.pattern.permute.xlu0 0
  %347 = vperm.xlu0 %346, %v273
  %v348 = vpop.permute.xlu0 %347
  %351 = vset.pattern.permute.xlu0 0
  %352 = vperm.xlu0 %351, %v274
  %v353 = vpop.permute.xlu0 %352
  %v355 = vmul.f32 %v181, %v278
  %v356 = vmul.f32 %v186, %v283
  %v357 = vmul.f32 %v191, %v288
  %v358 = vmul.f32 %v196, %v293
  %v359 = vmul.f32 %v201, %v298
  %v360 = vmul.f32 %v206, %v303
  %v361 = vmul.f32 %v211, %v308
  %v362 = vmul.f32 %v216, %v313
  %v363 = vmul.f32 %v221, %v318
  %v364 = vmul.f32 %v226, %v323
  %v365 = vmul.f32 %v231, %v328
  %v366 = vmul.f32 %v236, %v333
  %v367 = vmul.f32 %v241, %v338
  %v368 = vmul.f32 %v246, %v343
  %v369 = vmul.f32 %v251, %v348
  %v370 = vmul.f32 %v256, %v353
  %371 = vst [vmem:[%s4] sm:$0xff] %v355
  %372 = vst [vmem:[%s4 + $0x8] sm:$0xff] %v356
  %373 = vst [vmem:[%s4 + $0x10] sm:$0xff] %v357
  %374 = vst [vmem:[%s4 + $0x18] sm:$0xff] %v358
  %375 = vst [vmem:[%s4 + $0x20] sm:$0xff] %v359
  %376 = vst [vmem:[%s4 + $0x28] sm:$0xff] %v360
  %377 = vst [vmem:[%s4 + $0x30] sm:$0xff] %v361
  %378 = vst [vmem:[%s4 + $0x38] sm:$0xff] %v362
  %379 = vst [vmem:[%s4 + $0x40] sm:$0xff] %v363
  %380 = vst [vmem:[%s4 + $0x48] sm:$0xff] %v364
  %381 = vst [vmem:[%s4 + $0x50] sm:$0xff] %v365
  %382 = vst [vmem:[%s4 + $0x58] sm:$0xff] %v366
  %383 = vst [vmem:[%s4 + $0x60] sm:$0xff] %v367
  %384 = vst [vmem:[%s4 + $0x68] sm:$0xff] %v368
  %385 = vst [vmem:[%s4 + $0x70] sm:$0xff] %v369
  %386 = vst [vmem:[%s4 + $0x78] sm:$0xff] %v370
  %v387 = vadd.f32 %v355, %v356
  %v388 = vadd.f32 %v387, %v357
  %v389 = vadd.f32 %v388, %v358
  %v390 = vadd.f32 %v389, %v359
  %v391 = vadd.f32 %v390, %v360
  %v392 = vadd.f32 %v391, %v361
  %v393 = vadd.f32 %v392, %v362
  %v394 = vadd.f32 %v393, %v363
  %v395 = vadd.f32 %v394, %v364
  %v396 = vadd.f32 %v395, %v365
  %v397 = vadd.f32 %v396, %v366
  %v398 = vadd.f32 %v397, %v367
  %v399 = vadd.f32 %v398, %v368
  %v400 = vadd.f32 %v399, %v369
  %v401 = vadd.f32 %v400, %v370
  %v402 = vrot.slane %v401, 4
  %v403 = vadd.f32 %v401, %v402
  %v404 = vrot.slane %v403, 2
  %v405 = vadd.f32 %v403, %v404
  %v406 = vrot.slane %v405, 1
  %v407 = vadd.f32 %v405, %v406
  %v408 = vmul.f32 %v355, %v355
  %v409 = vmul.f32 %v356, %v356
  %v410 = vmul.f32 %v357, %v357
  %v411 = vmul.f32 %v358, %v358
  %v412 = vmul.f32 %v359, %v359
  %v413 = vmul.f32 %v360, %v360
  %v414 = vmul.f32 %v361, %v361
  %v415 = vmul.f32 %v362, %v362
  %v416 = vmul.f32 %v363, %v363
  %v417 = vmul.f32 %v364, %v364
  %v418 = vmul.f32 %v365, %v365
  %v419 = vmul.f32 %v366, %v366
  %v420 = vmul.f32 %v367, %v367
  %v421 = vmul.f32 %v368, %v368
  %v422 = vmul.f32 %v369, %v369
  %v423 = vmul.f32 %v370, %v370
  %v424 = vadd.f32 %v408, %v409
  %v425 = vadd.f32 %v424, %v410
  %v426 = vadd.f32 %v425, %v411
  %v427 = vadd.f32 %v426, %v412
  %v428 = vadd.f32 %v427, %v413
  %v429 = vadd.f32 %v428, %v414
  %v430 = vadd.f32 %v429, %v415
  %v431 = vadd.f32 %v430, %v416
  %v432 = vadd.f32 %v431, %v417
  %v433 = vadd.f32 %v432, %v418
  %v434 = vadd.f32 %v433, %v419
  %v435 = vadd.f32 %v434, %v420
  %v436 = vadd.f32 %v435, %v421
  %v437 = vadd.f32 %v436, %v422
  %v438 = vadd.f32 %v437, %v423
  %v439 = vrot.slane %v438, 4
  %v440 = vadd.f32 %v438, %v439
  %v441 = vrot.slane %v440, 2
  %v442 = vadd.f32 %v440, %v441
  %v443 = vrot.slane %v442, 1
  %v444 = vadd.f32 %v442, %v443
  %445 = vst [vmem:[%s5] sm:$0xff] %v407
  %446 = vst [vmem:[%s5 + $0x8] sm:$0xff] %v444
  // Predicated region
  $region18: #{gin_forward.8} parent=0 // pred_check
    _
  $region19: #{gin_forward.8} parent=0 // pred_check_branch
    %448 = sbr.rel (0) target = $region21
  $region20: #{gin_forward.8} parent=0 // pred_region
    _
  $region21: #{gin_forward.8} parent=0 // pred_fallthru
    _
  // Predicated region
  $region22: #{gin_forward.8} parent=0 // pred_check
    _
  $region23: #{gin_forward.8} parent=0 // pred_check_branch
    %450 = sbr.rel (0) target = $region25
  $region24: #{gin_forward.8} parent=0 // pred_region
    _
  $region25: #{gin_forward.8} parent=0 // pred_fallthru
    _
  // Predicated region
  $region26: #{gin_forward.8} parent=0 // pred_check
    _
  $region27: #{gin_forward.8} parent=0 // pred_check_branch
    %452 = sbr.rel (0) target = $region29
  $region28: #{gin_forward.8} parent=0 // pred_region
    _
  $region29: #{gin_forward.8} parent=0 // pred_fallthru
    _
  // Predicated region
  $region30: #{gin_forward.8} parent=0 // pred_check
    _
  $region31: #{gin_forward.8} parent=0 // pred_check_branch
    %454 = sbr.rel (0) target = $region33
  $region32: #{gin_forward.8} parent=0 // pred_region
    _
  $region33: #{gin_forward.8} parent=0 // pred_fallthru
    _

// kernel: gin_forward.13
$region0: #{gin_forward.13}
  #allocation0 [shape = 'u32[]', space=smem, size = 0x4, offset = 0x4, fixed_abs, tag = 'smem constant byte address 0x4 - core index']
  #allocation1 [shape = 'u32[144,128]{1,0:T(1,128)}', space=vmem, size = 0x12000, scoped, tag = 'internal scratch']
  #allocation2 [shape = 'f32[8,128]{1,0:T(8,128)}', space=vmem, size = 0x1000, scoped, tag = 'scratch operand']
  %s0 = inlined_call_operand.vmem [shape: f32[8,128], index: 0, kind: input, shape index: {}]
  %s1 = inlined_call_operand.vmem [shape: f32[128,128], index: 1, kind: input, shape index: {}]
  %s2 = inlined_call_operand.vmem [shape: f32[128,128], index: 2, kind: input, shape index: {}]
  %s3 = inlined_call_operand.vmem [shape: f32[128,128], index: 3, kind: input, shape index: {}]
  %s4 = inlined_call_operand.vmem [shape: f32[128,128], index: 4, kind: input, shape index: {}]
  %s5 = inlined_call_operand.vmem [shape: f32[128,128], index: 5, kind: input, shape index: {}]
  %s6 = inlined_call_operand.vmem [shape: f32[128,128], index: 6, kind: input, shape index: {}]
  %s7 = inlined_call_operand.vmem [shape: f32[1,128], index: 7, kind: input, shape index: {}]
  %s8 = inlined_call_operand.vmem [shape: f32[8,128], index: 8, kind: output, shape index: {}]
  %s9 = sld [smem:[#allocation0]]
  $region50: #{gin_forward.13} parent=0
    _
  %s11 = ssub.s32 1, %s9
  %s12 = scalar_select 0, %s11, %s9
  // Predicated region
  $region2: #{gin_forward.13} parent=0 // pred_check
    _
  $region3: #{gin_forward.13} parent=0 // pred_check_branch
    %14 = sbr.rel (0) target = $region5
  $region4: #{gin_forward.13} parent=0 // pred_region
    _
  $region5: #{gin_forward.13} parent=0 // pred_fallthru
    _
  // Predicated region
  $region6: #{gin_forward.13} parent=0 // pred_check
    _
  $region7: #{gin_forward.13} parent=0 // pred_check_branch
    %16 = sbr.rel (0) target = $region9
  $region8: #{gin_forward.13} parent=0 // pred_region
    _
  $region9: #{gin_forward.13} parent=0 // pred_fallthru
    _
  // Predicated region
  $region10: #{gin_forward.13} parent=0 // pred_check
    _
  $region11: #{gin_forward.13} parent=0 // pred_check_branch
    %18 = sbr.rel (0) target = $region13
  $region12: #{gin_forward.13} parent=0 // pred_region
    _
  $region13: #{gin_forward.13} parent=0 // pred_fallthru
    _
  // Predicated region
  $region14: #{gin_forward.13} parent=0 // pred_check
    _
  $region15: #{gin_forward.13} parent=0 // pred_check_branch
    %20 = sbr.rel (0) target = $region17
  $region16: #{gin_forward.13} parent=0 // pred_region
    _
  $region17: #{gin_forward.13} parent=0 // pred_fallthru
    _
  // Predicated region
  $region18: #{gin_forward.13} parent=0 // pred_check
    _
  $region19: #{gin_forward.13} parent=0 // pred_check_branch
    %22 = sbr.rel (0) target = $region21
  $region20: #{gin_forward.13} parent=0 // pred_region
    _
  $region21: #{gin_forward.13} parent=0 // pred_fallthru
    _
  // Predicated region
  $region22: #{gin_forward.13} parent=0 // pred_check
    _
  $region23: #{gin_forward.13} parent=0 // pred_check_branch
    %24 = sbr.rel (0) target = $region25
  $region24: #{gin_forward.13} parent=0 // pred_region
    _
  $region25: #{gin_forward.13} parent=0 // pred_fallthru
    _
  // Predicated region
  $region26: #{gin_forward.13} parent=0 // pred_check
    _
  $region27: #{gin_forward.13} parent=0 // pred_check_branch
    %26 = sbr.rel (0) target = $region29
  $region28: #{gin_forward.13} parent=0 // pred_region
    _
  $region29: #{gin_forward.13} parent=0 // pred_fallthru
    _
  // Predicated region
  $region30: #{gin_forward.13} parent=0 // pred_check
    _
  $region31: #{gin_forward.13} parent=0 // pred_check_branch
    %28 = sbr.rel (0) target = $region33
  $region32: #{gin_forward.13} parent=0 // pred_region
    _
  $region33: #{gin_forward.13} parent=0 // pred_fallthru
    _
  %p29 = scmp.eq.s32.totalorder 0, 0
  // Predicated region
  $region34: #{gin_forward.13} parent=0 // pred_check
    %p30 = pneg %p29
  $region35: #{gin_forward.13} parent=0 // pred_check_branch
    %32 = sbr.rel (%p30) target = $region37
  $region36: #{gin_forward.13} parent=0 // pred_region
    %33 = vst [vmem:[#allocation2] sm:$0xff] 0.0
  $region37: #{gin_forward.13} parent=0 // pred_fallthru
    _
  %v34 = vld [vmem:[%s0] sm:$0xff]
  %v35 = vld [vmem:[#allocation2] sm:$0xff]
  %v36 = vld [vmem:[%s1] sm:$0xff]
  %v37 = vld [vmem:[%s1 + $0x8] sm:$0xff]
  %v38 = vld [vmem:[%s1 + $0x10] sm:$0xff]
  %v39 = vld [vmem:[%s1 + $0x18] sm:$0xff]
  %v40 = vld [vmem:[%s1 + $0x20] sm:$0xff]
  %v41 = vld [vmem:[%s1 + $0x28] sm:$0xff]
  %v42 = vld [vmem:[%s1 + $0x30] sm:$0xff]
  %v43 = vld [vmem:[%s1 + $0x38] sm:$0xff]
  %v44 = vld [vmem:[%s1 + $0x40] sm:$0xff]
  %v45 = vld [vmem:[%s1 + $0x48] sm:$0xff]
  %v46 = vld [vmem:[%s1 + $0x50] sm:$0xff]
  %v47 = vld [vmem:[%s1 + $0x58] sm:$0xff]
  %v48 = vld [vmem:[%s1 + $0x60] sm:$0xff]
  %v49 = vld [vmem:[%s1 + $0x68] sm:$0xff]
  %v50 = vld [vmem:[%s1 + $0x70] sm:$0xff]
  %v51 = vld [vmem:[%s1 + $0x78] sm:$0xff]
  %52 = vmatprep.subr.mxu0 0.0
  %53 = vmatpush1.msra.mxu0 %v36
  %54 = vmatprep.subr.mxu0 0.0
  %55 = vmatpush1.msra.mxu0 %v37
  %56 = vmatprep.subr.mxu0 0.0
  %57 = vmatpush1.msra.mxu0 %v38
  %58 = vmatprep.subr.mxu0 0.0
  %59 = vmatpush1.msra.mxu0 %v39
  %60 = vmatprep.subr.mxu0 0.0
  %61 = vmatpush1.msra.mxu0 %v40
  %62 = vmatprep.subr.mxu0 0.0
  %63 = vmatpush1.msra.mxu0 %v41
  %64 = vmatprep.subr.mxu0 0.0
  %65 = vmatpush1.msra.mxu0 %v42
  %66 = vmatprep.subr.mxu0 0.0
  %67 = vmatpush1.msra.mxu0 %v43
  %68 = vmatprep.subr.mxu0 0.0
  %69 = vmatpush1.msra.mxu0 %v44
  %70 = vmatprep.subr.mxu0 0.0
  %71 = vmatpush1.msra.mxu0 %v45
  %72 = vmatprep.subr.mxu0 0.0
  %73 = vmatpush1.msra.mxu0 %v46
  %74 = vmatprep.subr.mxu0 0.0
  %75 = vmatpush1.msra.mxu0 %v47
  %76 = vmatprep.subr.mxu0 0.0
  %77 = vmatpush1.msra.mxu0 %v48
  %78 = vmatprep.subr.mxu0 0.0
  %79 = vmatpush1.msra.mxu0 %v49
  %80 = vmatprep.subr.mxu0 0.0
  %81 = vmatpush1.msra.mxu0 %v50
  %82 = vmatprep.subr.mxu0 0.0
  %83 = vmatpush1.msra.mxu0 %v51
  %84 = vmatprep.subr.mxu0 0.0
  %85 = vmatpush1.msra.mxu0 0.0
  %86 = vmatprep.subr.mxu0 0.0
  %87 = vmatpush1.msra.mxu0 0.0
  %88 = vmatprep.subr.mxu0 0.0
  %89 = vmatpush1.msra.mxu0 0.0
  %90 = vmatprep.subr.mxu0 0.0
  %91 = vmatpush1.msra.mxu0 0.0
  %92 = vmatprep.subr.mxu0 0.0
  %93 = vmatpush1.msra.mxu0 0.0
  %94 = vmatprep.subr.mxu0 0.0
  %95 = vmatpush1.msra.mxu0 0.0
  %96 = vmatprep.subr.mxu0 0.0
  %97 = vmatpush1.msra.mxu0 0.0
  %98 = vmatprep.subr.mxu0 0.0
  %99 = vmatpush1.msra.mxu0 0.0
  %100 = vmatprep.subr.mxu0 0.0
  %101 = vmatpush1.msra.mxu0 0.0
  %102 = vmatprep.subr.mxu0 0.0
  %103 = vmatpush1.msra.mxu0 0.0
  %104 = vmatprep.subr.mxu0 0.0
  %105 = vmatpush1.msra.mxu0 0.0
  %106 = vmatprep.subr.mxu0 0.0
  %107 = vmatpush1.msra.mxu0 0.0
  %108 = vmatprep.subr.mxu0 0.0
  %109 = vmatpush1.msra.mxu0 0.0
  %110 = vmatprep.subr.mxu0 0.0
  %111 = vmatpush1.msra.mxu0 0.0
  %112 = vmatprep.subr.mxu0 0.0
  %113 = vmatpush1.msra.mxu0 0.0
  %114 = vmatprep.subr.mxu0 0.0
  %115 = vmatpush1.msra.mxu0 0.0
  %116 = vmatprep.mubr.f32.mxu0 0.0
  %117 = vmatmul.mubr.f32.gmra.mrb[0].mxu0 %v34
  %v118 = vpop.f32.mrb[0].mxu0
  %v119 = vadd.f32 0.0, %v118
  %v120 = vpop.f32.mrb[0].mxu0
  %121 = vdwg.mxu0
  %v122 = vld [vmem:[%s4] sm:$0xff]
  %v123 = vld [vmem:[%s4 + $0x8] sm:$0xff]
  %v124 = vld [vmem:[%s4 + $0x10] sm:$0xff]
  %v125 = vld [vmem:[%s4 + $0x18] sm:$0xff]
  %v126 = vld [vmem:[%s4 + $0x20] sm:$0xff]
  %v127 = vld [vmem:[%s4 + $0x28] sm:$0xff]
  %v128 = vld [vmem:[%s4 + $0x30] sm:$0xff]
  %v129 = vld [vmem:[%s4 + $0x38] sm:$0xff]
  %v130 = vld [vmem:[%s4 + $0x40] sm:$0xff]
  %v131 = vld [vmem:[%s4 + $0x48] sm:$0xff]
  %v132 = vld [vmem:[%s4 + $0x50] sm:$0xff]
  %v133 = vld [vmem:[%s4 + $0x58] sm:$0xff]
  %v134 = vld [vmem:[%s4 + $0x60] sm:$0xff]
  %v135 = vld [vmem:[%s4 + $0x68] sm:$0xff]
  %v136 = vld [vmem:[%s4 + $0x70] sm:$0xff]
  %v137 = vld [vmem:[%s4 + $0x78] sm:$0xff]
  %138 = vmatprep.subr.mxu0 0.0
  %139 = vmatpush1.msra.mxu0 %v122
  %140 = vmatprep.subr.mxu0 0.0
  %141 = vmatpush1.msra.mxu0 %v123
  %142 = vmatprep.subr.mxu0 0.0
  %143 = vmatpush1.msra.mxu0 %v124
  %144 = vmatprep.subr.mxu0 0.0
  %145 = vmatpush1.msra.mxu0 %v125
  %146 = vmatprep.subr.mxu0 0.0
  %147 = vmatpush1.msra.mxu0 %v126
  %148 = vmatprep.subr.mxu0 0.0
  %149 = vmatpush1.msra.mxu0 %v127
  %150 = vmatprep.subr.mxu0 0.0
  %151 = vmatpush1.msra.mxu0 %v128
  %152 = vmatprep.subr.mxu0 0.0
  %153 = vmatpush1.msra.mxu0 %v129
  %154 = vmatprep.subr.mxu0 0.0
  %155 = vmatpush1.msra.mxu0 %v130
  %156 = vmatprep.subr.mxu0 0.0
  %157 = vmatpush1.msra.mxu0 %v131
  %158 = vmatprep.subr.mxu0 0.0
  %159 = vmatpush1.msra.mxu0 %v132
  %160 = vmatprep.subr.mxu0 0.0
  %161 = vmatpush1.msra.mxu0 %v133
  %162 = vmatprep.subr.mxu0 0.0
  %163 = vmatpush1.msra.mxu0 %v134
  %164 = vmatprep.subr.mxu0 0.0
  %165 = vmatpush1.msra.mxu0 %v135
  %166 = vmatprep.subr.mxu0 0.0
  %167 = vmatpush1.msra.mxu0 %v136
  %168 = vmatprep.subr.mxu0 0.0
  %169 = vmatpush1.msra.mxu0 %v137
  %170 = vmatprep.subr.mxu0 0.0
  %171 = vmatpush1.msra.mxu0 0.0
  %172 = vmatprep.subr.mxu0 0.0
  %173 = vmatpush1.msra.mxu0 0.0
  %174 = vmatprep.subr.mxu0 0.0
  %175 = vmatpush1.msra.mxu0 0.0
  %176 = vmatprep.subr.mxu0 0.0
  %177 = vmatpush1.msra.mxu0 0.0
  %178 = vmatprep.subr.mxu0 0.0
  %179 = vmatpush1.msra.mxu0 0.0
  %180 = vmatprep.subr.mxu0 0.0
  %181 = vmatpush1.msra.mxu0 0.0
  %182 = vmatprep.subr.mxu0 0.0
  %183 = vmatpush1.msra.mxu0 0.0
  %184 = vmatprep.subr.mxu0 0.0
  %185 = vmatpush1.msra.mxu0 0.0
  %186 = vmatprep.subr.mxu0 0.0
  %187 = vmatpush1.msra.mxu0 0.0
  %188 = vmatprep.subr.mxu0 0.0
  %189 = vmatpush1.msra.mxu0 0.0
  %190 = vmatprep.subr.mxu0 0.0
  %191 = vmatpush1.msra.mxu0 0.0
  %192 = vmatprep.subr.mxu0 0.0
  %193 = vmatpush1.msra.mxu0 0.0
  %194 = vmatprep.subr.mxu0 0.0
  %195 = vmatpush1.msra.mxu0 0.0
  %196 = vmatprep.subr.mxu0 0.0
  %197 = vmatpush1.msra.mxu0 0.0
  %198 = vmatprep.subr.mxu0 0.0
  %199 = vmatpush1.msra.mxu0 0.0
  %200 = vmatprep.subr.mxu0 0.0
  %201 = vmatpush1.msra.mxu0 0.0
  %202 = vmatprep.mubr.f32.mxu0 0.0
  %203 = vmatmul.mubr.f32.gmra.mrb[0].mxu0 %v119
  %v204 = vpop.f32.mrb[0].mxu0
  %v205 = vadd.f32 0.0, %v204
  %v206 = vpop.f32.mrb[0].mxu0
  %207 = vdwg.mxu0
  %v208 = vadd.f32 %v35, %v205
  %v209 = vld [vmem:[%s2] sm:$0xff]
  %v210 = vld [vmem:[%s2 + $0x8] sm:$0xff]
  %v211 = vld [vmem:[%s2 + $0x10] sm:$0xff]
  %v212 = vld [vmem:[%s2 + $0x18] sm:$0xff]
  %v213 = vld [vmem:[%s2 + $0x20] sm:$0xff]
  %v214 = vld [vmem:[%s2 + $0x28] sm:$0xff]
  %v215 = vld [vmem:[%s2 + $0x30] sm:$0xff]
  %v216 = vld [vmem:[%s2 + $0x38] sm:$0xff]
  %v217 = vld [vmem:[%s2 + $0x40] sm:$0xff]
  %v218 = vld [vmem:[%s2 + $0x48] sm:$0xff]
  %v219 = vld [vmem:[%s2 + $0x50] sm:$0xff]
  %v220 = vld [vmem:[%s2 + $0x58] sm:$0xff]
  %v221 = vld [vmem:[%s2 + $0x60] sm:$0xff]
  %v222 = vld [vmem:[%s2 + $0x68] sm:$0xff]
  %v223 = vld [vmem:[%s2 + $0x70] sm:$0xff]
  %v224 = vld [vmem:[%s2 + $0x78] sm:$0xff]
  %225 = vmatprep.subr.mxu0 0.0
  %226 = vmatpush1.msra.mxu0 %v209
  %227 = vmatprep.subr.mxu0 0.0
  %228 = vmatpush1.msra.mxu0 %v210
  %229 = vmatprep.subr.mxu0 0.0
  %230 = vmatpush1.msra.mxu0 %v211
  %231 = vmatprep.subr.mxu0 0.0
  %232 = vmatpush1.msra.mxu0 %v212
  %233 = vmatprep.subr.mxu0 0.0
  %234 = vmatpush1.msra.mxu0 %v213
  %235 = vmatprep.subr.mxu0 0.0
  %236 = vmatpush1.msra.mxu0 %v214
  %237 = vmatprep.subr.mxu0 0.0
  %238 = vmatpush1.msra.mxu0 %v215
  %239 = vmatprep.subr.mxu0 0.0
  %240 = vmatpush1.msra.mxu0 %v216
  %241 = vmatprep.subr.mxu0 0.0
  %242 = vmatpush1.msra.mxu0 %v217
  %243 = vmatprep.subr.mxu0 0.0
  %244 = vmatpush1.msra.mxu0 %v218
  %245 = vmatprep.subr.mxu0 0.0
  %246 = vmatpush1.msra.mxu0 %v219
  %247 = vmatprep.subr.mxu0 0.0
  %248 = vmatpush1.msra.mxu0 %v220
  %249 = vmatprep.subr.mxu0 0.0
  %250 = vmatpush1.msra.mxu0 %v221
  %251 = vmatprep.subr.mxu0 0.0
  %252 = vmatpush1.msra.mxu0 %v222
  %253 = vmatprep.subr.mxu0 0.0
  %254 = vmatpush1.msra.mxu0 %v223
  %255 = vmatprep.subr.mxu0 0.0
  %256 = vmatpush1.msra.mxu0 %v224
  %257 = vmatprep.subr.mxu0 0.0
  %258 = vmatpush1.msra.mxu0 0.0
  %259 = vmatprep.subr.mxu0 0.0
  %260 = vmatpush1.msra.mxu0 0.0
  %261 = vmatprep.subr.mxu0 0.0
  %262 = vmatpush1.msra.mxu0 0.0
  %263 = vmatprep.subr.mxu0 0.0
  %264 = vmatpush1.msra.mxu0 0.0
  %265 = vmatprep.subr.mxu0 0.0
  %266 = vmatpush1.msra.mxu0 0.0
  %267 = vmatprep.subr.mxu0 0.0
  %268 = vmatpush1.msra.mxu0 0.0
  %269 = vmatprep.subr.mxu0 0.0
  %270 = vmatpush1.msra.mxu0 0.0
  %271 = vmatprep.subr.mxu0 0.0
  %272 = vmatpush1.msra.mxu0 0.0
  %273 = vmatprep.subr.mxu0 0.0
  %274 = vmatpush1.msra.mxu0 0.0
  %275 = vmatprep.subr.mxu0 0.0
  %276 = vmatpush1.msra.mxu0 0.0
  %277 = vmatprep.subr.mxu0 0.0
  %278 = vmatpush1.msra.mxu0 0.0
  %279 = vmatprep.subr.mxu0 0.0
  %280 = vmatpush1.msra.mxu0 0.0
  %281 = vmatprep.subr.mxu0 0.0
  %282 = vmatpush1.msra.mxu0 0.0
  %283 = vmatprep.subr.mxu0 0.0
  %284 = vmatpush1.msra.mxu0 0.0
  %285 = vmatprep.subr.mxu0 0.0
  %286 = vmatpush1.msra.mxu0 0.0
  %287 = vmatprep.subr.mxu0 0.0
  %288 = vmatpush1.msra.mxu0 0.0
  %289 = vmatprep.mubr.f32.mxu0 0.0
  %290 = vmatmul.mubr.f32.gmra.mrb[0].mxu0 %v34
  %v291 = vpop.f32.mrb[0].mxu0
  %v292 = vadd.f32 0.0, %v291
  %v293 = vpop.f32.mrb[0].mxu0
  %294 = vdwg.mxu0
  %v295 = vld [vmem:[%s5] sm:$0xff]
  %v296 = vld [vmem:[%s5 + $0x8] sm:$0xff]
  %v297 = vld [vmem:[%s5 + $0x10] sm:$0xff]
  %v298 = vld [vmem:[%s5 + $0x18] sm:$0xff]
  %v299 = vld [vmem:[%s5 + $0x20] sm:$0xff]
  %v300 = vld [vmem:[%s5 + $0x28] sm:$0xff]
  %v301 = vld [vmem:[%s5 + $0x30] sm:$0xff]
  %v302 = vld [vmem:[%s5 + $0x38] sm:$0xff]
  %v303 = vld [vmem:[%s5 + $0x40] sm:$0xff]
  %v304 = vld [vmem:[%s5 + $0x48] sm:$0xff]
  %v305 = vld [vmem:[%s5 + $0x50] sm:$0xff]
  %v306 = vld [vmem:[%s5 + $0x58] sm:$0xff]
  %v307 = vld [vmem:[%s5 + $0x60] sm:$0xff]
  %v308 = vld [vmem:[%s5 + $0x68] sm:$0xff]
  %v309 = vld [vmem:[%s5 + $0x70] sm:$0xff]
  %v310 = vld [vmem:[%s5 + $0x78] sm:$0xff]
  %311 = vmatprep.subr.mxu0 0.0
  %312 = vmatpush1.msra.mxu0 %v295
  %313 = vmatprep.subr.mxu0 0.0
  %314 = vmatpush1.msra.mxu0 %v296
  %315 = vmatprep.subr.mxu0 0.0
  %316 = vmatpush1.msra.mxu0 %v297
  %317 = vmatprep.subr.mxu0 0.0
  %318 = vmatpush1.msra.mxu0 %v298
  %319 = vmatprep.subr.mxu0 0.0
  %320 = vmatpush1.msra.mxu0 %v299
  %321 = vmatprep.subr.mxu0 0.0
  %322 = vmatpush1.msra.mxu0 %v300
  %323 = vmatprep.subr.mxu0 0.0
  %324 = vmatpush1.msra.mxu0 %v301
  %325 = vmatprep.subr.mxu0 0.0
  %326 = vmatpush1.msra.mxu0 %v302
  %327 = vmatprep.subr.mxu0 0.0
  %328 = vmatpush1.msra.mxu0 %v303
  %329 = vmatprep.subr.mxu0 0.0
  %330 = vmatpush1.msra.mxu0 %v304
  %331 = vmatprep.subr.mxu0 0.0
  %332 = vmatpush1.msra.mxu0 %v305
  %333 = vmatprep.subr.mxu0 0.0
  %334 = vmatpush1.msra.mxu0 %v306
  %335 = vmatprep.subr.mxu0 0.0
  %336 = vmatpush1.msra.mxu0 %v307
  %337 = vmatprep.subr.mxu0 0.0
  %338 = vmatpush1.msra.mxu0 %v308
  %339 = vmatprep.subr.mxu0 0.0
  %340 = vmatpush1.msra.mxu0 %v309
  %341 = vmatprep.subr.mxu0 0.0
  %342 = vmatpush1.msra.mxu0 %v310
  %343 = vmatprep.subr.mxu0 0.0
  %344 = vmatpush1.msra.mxu0 0.0
  %345 = vmatprep.subr.mxu0 0.0
  %346 = vmatpush1.msra.mxu0 0.0
  %347 = vmatprep.subr.mxu0 0.0
  %348 = vmatpush1.msra.mxu0 0.0
  %349 = vmatprep.subr.mxu0 0.0
  %350 = vmatpush1.msra.mxu0 0.0
  %351 = vmatprep.subr.mxu0 0.0
  %352 = vmatpush1.msra.mxu0 0.0
  %353 = vmatprep.subr.mxu0 0.0
  %354 = vmatpush1.msra.mxu0 0.0
  %355 = vmatprep.subr.mxu0 0.0
  %356 = vmatpush1.msra.mxu0 0.0
  %357 = vmatprep.subr.mxu0 0.0
  %358 = vmatpush1.msra.mxu0 0.0
  %359 = vmatprep.subr.mxu0 0.0
  %360 = vmatpush1.msra.mxu0 0.0
  %361 = vmatprep.subr.mxu0 0.0
  %362 = vmatpush1.msra.mxu0 0.0
  %363 = vmatprep.subr.mxu0 0.0
  %364 = vmatpush1.msra.mxu0 0.0
  %365 = vmatprep.subr.mxu0 0.0
  %366 = vmatpush1.msra.mxu0 0.0
  %367 = vmatprep.subr.mxu0 0.0
  %368 = vmatpush1.msra.mxu0 0.0
  %369 = vmatprep.subr.mxu0 0.0
  %370 = vmatpush1.msra.mxu0 0.0
  %371 = vmatprep.subr.mxu0 0.0
  %372 = vmatpush1.msra.mxu0 0.0
  %373 = vmatprep.subr.mxu0 0.0
  %374 = vmatpush1.msra.mxu0 0.0
  %375 = vmatprep.mubr.f32.mxu0 0.0
  %376 = vmatmul.mubr.f32.gmra.mrb[0].mxu0 %v292
  %v377 = vpop.f32.mrb[0].mxu0
  %v378 = vadd.f32 0.0, %v377
  %v379 = vpop.f32.mrb[0].mxu0
  %380 = vdwg.mxu0
  %v381 = vadd.f32 %v208, %v378
  %v382 = vld [vmem:[%s3] sm:$0xff]
  %v383 = vld [vmem:[%s3 + $0x8] sm:$0xff]
  %v384 = vld [vmem:[%s3 + $0x10] sm:$0xff]
  %v385 = vld [vmem:[%s3 + $0x18] sm:$0xff]
  %v386 = vld [vmem:[%s3 + $0x20] sm:$0xff]
  %v387 = vld [vmem:[%s3 + $0x28] sm:$0xff]
  %v388 = vld [vmem:[%s3 + $0x30] sm:$0xff]
  %v389 = vld [vmem:[%s3 + $0x38] sm:$0xff]
  %v390 = vld [vmem:[%s3 + $0x40] sm:$0xff]
  %v391 = vld [vmem:[%s3 + $0x48] sm:$0xff]
  %v392 = vld [vmem:[%s3 + $0x50] sm:$0xff]
  %v393 = vld [vmem:[%s3 + $0x58] sm:$0xff]
  %v394 = vld [vmem:[%s3 + $0x60] sm:$0xff]
  %v395 = vld [vmem:[%s3 + $0x68] sm:$0xff]
  %v396 = vld [vmem:[%s3 + $0x70] sm:$0xff]
  %v397 = vld [vmem:[%s3 + $0x78] sm:$0xff]
  %398 = vmatprep.subr.mxu0 0.0
  %399 = vmatpush1.msra.mxu0 %v382
  %400 = vmatprep.subr.mxu0 0.0
  %401 = vmatpush1.msra.mxu0 %v383
  %402 = vmatprep.subr.mxu0 0.0
  %403 = vmatpush1.msra.mxu0 %v384
  %404 = vmatprep.subr.mxu0 0.0
  %405 = vmatpush1.msra.mxu0 %v385
  %406 = vmatprep.subr.mxu0 0.0
  %407 = vmatpush1.msra.mxu0 %v386
  %408 = vmatprep.subr.mxu0 0.0
  %409 = vmatpush1.msra.mxu0 %v387
  %410 = vmatprep.subr.mxu0 0.0
  %411 = vmatpush1.msra.mxu0 %v388
  %412 = vmatprep.subr.mxu0 0.0
  %413 = vmatpush1.msra.mxu0 %v389
  %414 = vmatprep.subr.mxu0 0.0
  %415 = vmatpush1.msra.mxu0 %v390
  %416 = vmatprep.subr.mxu0 0.0
  %417 = vmatpush1.msra.mxu0 %v391
  %418 = vmatprep.subr.mxu0 0.0
  %419 = vmatpush1.msra.mxu0 %v392
  %420 = vmatprep.subr.mxu0 0.0
  %421 = vmatpush1.msra.mxu0 %v393
  %422 = vmatprep.subr.mxu0 0.0
  %423 = vmatpush1.msra.mxu0 %v394
  %424 = vmatprep.subr.mxu0 0.0
  %425 = vmatpush1.msra.mxu0 %v395
  %426 = vmatprep.subr.mxu0 0.0
  %427 = vmatpush1.msra.mxu0 %v396
  %428 = vmatprep.subr.mxu0 0.0
  %429 = vmatpush1.msra.mxu0 %v397
  %430 = vmatprep.subr.mxu0 0.0
  %431 = vmatpush1.msra.mxu0 0.0
  %432 = vmatprep.subr.mxu0 0.0
  %433 = vmatpush1.msra.mxu0 0.0
  %434 = vmatprep.subr.mxu0 0.0
  %435 = vmatpush1.msra.mxu0 0.0
  %436 = vmatprep.subr.mxu0 0.0
  %437 = vmatpush1.msra.mxu0 0.0
  %438 = vmatprep.subr.mxu0 0.0
  %439 = vmatpush1.msra.mxu0 0.0
  %440 = vmatprep.subr.mxu0 0.0
  %441 = vmatpush1.msra.mxu0 0.0
  %442 = vmatprep.subr.mxu0 0.0
  %443 = vmatpush1.msra.mxu0 0.0
  %444 = vmatprep.subr.mxu0 0.0
  %445 = vmatpush1.msra.mxu0 0.0
  %446 = vmatprep.subr.mxu0 0.0
  %447 = vmatpush1.msra.mxu0 0.0
  %448 = vmatprep.subr.mxu0 0.0
  %449 = vmatpush1.msra.mxu0 0.0
  %450 = vmatprep.subr.mxu0 0.0
  %451 = vmatpush1.msra.mxu0 0.0
  %452 = vmatprep.subr.mxu0 0.0
  %453 = vmatpush1.msra.mxu0 0.0
  %454 = vmatprep.subr.mxu0 0.0
  %455 = vmatpush1.msra.mxu0 0.0
  %456 = vmatprep.subr.mxu0 0.0
  %457 = vmatpush1.msra.mxu0 0.0
  %458 = vmatprep.subr.mxu0 0.0
  %459 = vmatpush1.msra.mxu0 0.0
  %460 = vmatprep.subr.mxu0 0.0
  %461 = vmatpush1.msra.mxu0 0.0
  %462 = vmatprep.mubr.f32.mxu0 0.0
  %463 = vmatmul.mubr.f32.gmra.mrb[0].mxu0 %v34
  %v464 = vpop.f32.mrb[0].mxu0
  %v465 = vadd.f32 0.0, %v464
  %v466 = vpop.f32.mrb[0].mxu0
  %467 = vdwg.mxu0
  %v468 = vld [vmem:[%s6] sm:$0xff]
  %v469 = vld [vmem:[%s6 + $0x8] sm:$0xff]
  %v470 = vld [vmem:[%s6 + $0x10] sm:$0xff]
  %v471 = vld [vmem:[%s6 + $0x18] sm:$0xff]
  %v472 = vld [vmem:[%s6 + $0x20] sm:$0xff]
  %v473 = vld [vmem:[%s6 + $0x28] sm:$0xff]
  %v474 = vld [vmem:[%s6 + $0x30] sm:$0xff]
  %v475 = vld [vmem:[%s6 + $0x38] sm:$0xff]
  %v476 = vld [vmem:[%s6 + $0x40] sm:$0xff]
  %v477 = vld [vmem:[%s6 + $0x48] sm:$0xff]
  %v478 = vld [vmem:[%s6 + $0x50] sm:$0xff]
  %v479 = vld [vmem:[%s6 + $0x58] sm:$0xff]
  %v480 = vld [vmem:[%s6 + $0x60] sm:$0xff]
  %v481 = vld [vmem:[%s6 + $0x68] sm:$0xff]
  %v482 = vld [vmem:[%s6 + $0x70] sm:$0xff]
  %v483 = vld [vmem:[%s6 + $0x78] sm:$0xff]
  %484 = vmatprep.subr.mxu0 0.0
  %485 = vmatpush1.msra.mxu0 %v468
  %486 = vmatprep.subr.mxu0 0.0
  %487 = vmatpush1.msra.mxu0 %v469
  %488 = vmatprep.subr.mxu0 0.0
  %489 = vmatpush1.msra.mxu0 %v470
  %490 = vmatprep.subr.mxu0 0.0
  %491 = vmatpush1.msra.mxu0 %v471
  %492 = vmatprep.subr.mxu0 0.0
  %493 = vmatpush1.msra.mxu0 %v472
  %494 = vmatprep.subr.mxu0 0.0
  %495 = vmatpush1.msra.mxu0 %v473
  %496 = vmatprep.subr.mxu0 0.0
  %497 = vmatpush1.msra.mxu0 %v474
  %498 = vmatprep.subr.mxu0 0.0
  %499 = vmatpush1.msra.mxu0 %v475
  %500 = vmatprep.subr.mxu0 0.0
  %501 = vmatpush1.msra.mxu0 %v476
  %502 = vmatprep.subr.mxu0 0.0
  %503 = vmatpush1.msra.mxu0 %v477
  %504 = vmatprep.subr.mxu0 0.0
  %505 = vmatpush1.msra.mxu0 %v478
  %506 = vmatprep.subr.mxu0 0.0
  %507 = vmatpush1.msra.mxu0 %v479
  %508 = vmatprep.subr.mxu0 0.0
  %509 = vmatpush1.msra.mxu0 %v480
  %510 = vmatprep.subr.mxu0 0.0
  %511 = vmatpush1.msra.mxu0 %v481
  %512 = vmatprep.subr.mxu0 0.0
  %513 = vmatpush1.msra.mxu0 %v482
  %514 = vmatprep.subr.mxu0 0.0
  %515 = vmatpush1.msra.mxu0 %v483
  %516 = vmatprep.subr.mxu0 0.0
  %517 = vmatpush1.msra.mxu0 0.0
  %518 = vmatprep.subr.mxu0 0.0
  %519 = vmatpush1.msra.mxu0 0.0
  %520 = vmatprep.subr.mxu0 0.0
  %521 = vmatpush1.msra.mxu0 0.0
  %522 = vmatprep.subr.mxu0 0.0
  %523 = vmatpush1.msra.mxu0 0.0
  %524 = vmatprep.subr.mxu0 0.0
  %525 = vmatpush1.msra.mxu0 0.0
  %526 = vmatprep.subr.mxu0 0.0
  %527 = vmatpush1.msra.mxu0 0.0
  %528 = vmatprep.subr.mxu0 0.0
  %529 = vmatpush1.msra.mxu0 0.0
  %530 = vmatprep.subr.mxu0 0.0
  %531 = vmatpush1.msra.mxu0 0.0
  %532 = vmatprep.subr.mxu0 0.0
  %533 = vmatpush1.msra.mxu0 0.0
  %534 = vmatprep.subr.mxu0 0.0
  %535 = vmatpush1.msra.mxu0 0.0
  %536 = vmatprep.subr.mxu0 0.0
  %537 = vmatpush1.msra.mxu0 0.0
  %538 = vmatprep.subr.mxu0 0.0
  %539 = vmatpush1.msra.mxu0 0.0
  %540 = vmatprep.subr.mxu0 0.0
  %541 = vmatpush1.msra.mxu0 0.0
  %542 = vmatprep.subr.mxu0 0.0
  %543 = vmatpush1.msra.mxu0 0.0
  %544 = vmatprep.subr.mxu0 0.0
  %545 = vmatpush1.msra.mxu0 0.0
  %546 = vmatprep.subr.mxu0 0.0
  %547 = vmatpush1.msra.mxu0 0.0
  %548 = vmatprep.mubr.f32.mxu0 0.0
  %549 = vmatmul.mubr.f32.gmra.mrb[0].mxu0 %v465
  %v550 = vpop.f32.mrb[0].mxu0
  %v551 = vadd.f32 0.0, %v550
  %v552 = vpop.f32.mrb[0].mxu0
  %553 = vdwg.mxu0
  %v554 = vadd.f32 %v381, %v551
  %555 = vst [vmem:[#allocation2] sm:$0xff] %v554
  // Predicated region
  $region38: #{gin_forward.13} parent=0 // pred_check
    %p556 = pneg %p29
  $region39: #{gin_forward.13} parent=0 // pred_check_branch
    %558 = sbr.rel (%p556) target = $region41
  $region40: #{gin_forward.13} parent=0 // pred_region
    %v559 = vld [vmem:[#allocation2] sm:$0xff]
    %v560 = vld [vmem:[%s7] sm:$0x1]
    %v562 = vlaneseq
    %v563 = vshrl.u32 %v562, 7
    %v564 = vsub.s32 0, %v563
    %v565 = vrot.slane %v560, %v564
    %v567 = vadd.f32 %v559, %v565
    %568 = vst [vmem:[%s8] sm:$0xff] %v567
  $region41: #{gin_forward.13} parent=0 // pred_fallthru
    _
  // Predicated region
  $region42: #{gin_forward.13} parent=0 // pred_check
    _
  $region43: #{gin_forward.13} parent=0 // pred_check_branch
    %570 = sbr.rel (0) target = $region45
  $region44: #{gin_forward.13} parent=0 // pred_region
    _
  $region45: #{gin_forward.13} parent=0 // pred_fallthru
    _
  // Predicated region
  $region46: #{gin_forward.13} parent=0 // pred_check
    _
  $region47: #{gin_forward.13} parent=0 // pred_check_branch
    %572 = sbr.rel (0) target = $region49
  $region48: #{gin_forward.13} parent=0 // pred_region
    _
  $region49: #{gin_forward.13} parent=0 // pred_fallthru
    _

// kernel: gin_forward.7
$region0: #{gin_forward.7}
  #allocation0 [shape = 'u32[]', space=smem, size = 0x4, offset = 0x4, fixed_abs, tag = 'smem constant byte address 0x4 - core index']
  #allocation1 [shape = 'u32[144,128]{1,0:T(1,128)}', space=vmem, size = 0x12000, scoped, tag = 'internal scratch']
  #allocation2 [shape = 'f32[128,128]{1,0:T(8,128)}', space=vmem, size = 0x10000, scoped, tag = 'scratch operand']
  %s0 = inlined_call_operand.vmem [shape: bf16[128,128], index: 0, kind: input, shape index: {}]
  %s1 = inlined_call_operand.vmem [shape: bf16[128,128], index: 1, kind: input, shape index: {}]
  %s2 = inlined_call_operand.vmem [shape: f32[128,128], index: 2, kind: input, shape index: {}]
  %s3 = inlined_call_operand.vmem [shape: f32[128,1], index: 3, kind: input, shape index: {}]
  %s4 = inlined_call_operand.vmem [shape: f32[128,128], index: 4, kind: input, shape index: {}]
  %s5 = inlined_call_operand.vmem [shape: f32[1,128], index: 5, kind: input, shape index: {}]
  %s6 = inlined_call_operand.vmem [shape: f32[128,128], index: 6, kind: output, shape index: {0}]
  %s7 = inlined_call_operand.vmem [shape: f32[1,16,128], index: 7, kind: output, shape index: {1}]
  %8 = xla_tuple %s6, %s7
  %s9 = sld [smem:[#allocation0]]
  $region50: #{gin_forward.7} parent=0
    _
  %s11 = ssub.s32 1, %s9
  %s12 = scalar_select 0, %s11, %s9
  // Predicated region
  $region2: #{gin_forward.7} parent=0 // pred_check
    _
  $region3: #{gin_forward.7} parent=0 // pred_check_branch
    %14 = sbr.rel (0) target = $region5
  $region4: #{gin_forward.7} parent=0 // pred_region
    _
  $region5: #{gin_forward.7} parent=0 // pred_fallthru
    _
  // Predicated region
  $region6: #{gin_forward.7} parent=0 // pred_check
    _
  $region7: #{gin_forward.7} parent=0 // pred_check_branch
    %16 = sbr.rel (0) target = $region9
  $region8: #{gin_forward.7} parent=0 // pred_region
    _
  $region9: #{gin_forward.7} parent=0 // pred_fallthru
    _
  // Predicated region
  $region10: #{gin_forward.7} parent=0 // pred_check
    _
  $region11: #{gin_forward.7} parent=0 // pred_check_branch
    %18 = sbr.rel (0) target = $region13
  $region12: #{gin_forward.7} parent=0 // pred_region
    _
  $region13: #{gin_forward.7} parent=0 // pred_fallthru
    _
  // Predicated region
  $region14: #{gin_forward.7} parent=0 // pred_check
    _
  $region15: #{gin_forward.7} parent=0 // pred_check_branch
    %20 = sbr.rel (0) target = $region17
  $region16: #{gin_forward.7} parent=0 // pred_region
    _
  $region17: #{gin_forward.7} parent=0 // pred_fallthru
    _
  // Predicated region
  $region18: #{gin_forward.7} parent=0 // pred_check
    _
  $region19: #{gin_forward.7} parent=0 // pred_check_branch
    %22 = sbr.rel (0) target = $region21
  $region20: #{gin_forward.7} parent=0 // pred_region
    _
  $region21: #{gin_forward.7} parent=0 // pred_fallthru
    _
  // Predicated region
  $region22: #{gin_forward.7} parent=0 // pred_check
    _
  $region23: #{gin_forward.7} parent=0 // pred_check_branch
    %24 = sbr.rel (0) target = $region25
  $region24: #{gin_forward.7} parent=0 // pred_region
    _
  $region25: #{gin_forward.7} parent=0 // pred_fallthru
    _
  %p26 = scmp.eq.s32.totalorder 0, 0
  // Predicated region
  $region26: #{gin_forward.7} parent=0 // pred_check
    %p27 = pneg %p26
  $region27: #{gin_forward.7} parent=0 // pred_check_branch
    %29 = sbr.rel (%p27) target = $region29
  $region28: #{gin_forward.7} parent=0 // pred_region
    %30 = vst [vmem:[#allocation2] sm:$0xff] 0.0
    %31 = vst [vmem:[#allocation2 + $0x8] sm:$0xff] 0.0
    %32 = vst [vmem:[#allocation2 + $0x10] sm:$0xff] 0.0
    %33 = vst [vmem:[#allocation2 + $0x18] sm:$0xff] 0.0
    %34 = vst [vmem:[#allocation2 + $0x20] sm:$0xff] 0.0
    %35 = vst [vmem:[#allocation2 + $0x28] sm:$0xff] 0.0
    %36 = vst [vmem:[#allocation2 + $0x30] sm:$0xff] 0.0
    %37 = vst [vmem:[#allocation2 + $0x38] sm:$0xff] 0.0
    %38 = vst [vmem:[#allocation2 + $0x40] sm:$0xff] 0.0
    %39 = vst [vmem:[#allocation2 + $0x48] sm:$0xff] 0.0
    %40 = vst [vmem:[#allocation2 + $0x50] sm:$0xff] 0.0
    %41 = vst [vmem:[#allocation2 + $0x58] sm:$0xff] 0.0
    %42 = vst [vmem:[#allocation2 + $0x60] sm:$0xff] 0.0
    %43 = vst [vmem:[#allocation2 + $0x68] sm:$0xff] 0.0
    %44 = vst [vmem:[#allocation2 + $0x70] sm:$0xff] 0.0
    %45 = vst [vmem:[#allocation2 + $0x78] sm:$0xff] 0.0
  $region29: #{gin_forward.7} parent=0 // pred_fallthru
    _
  %v46 = vld [vmem:[#allocation2] sm:$0xff]
  %v47 = vld [vmem:[#allocation2 + $0x8] sm:$0xff]
  %v48 = vld [vmem:[#allocation2 + $0x10] sm:$0xff]
  %v49 = vld [vmem:[#allocation2 + $0x18] sm:$0xff]
  %v50 = vld [vmem:[#allocation2 + $0x20] sm:$0xff]
  %v51 = vld [vmem:[#allocation2 + $0x28] sm:$0xff]
  %v52 = vld [vmem:[#allocation2 + $0x30] sm:$0xff]
  %v53 = vld [vmem:[#allocation2 + $0x38] sm:$0xff]
  %v54 = vld [vmem:[#allocation2 + $0x40] sm:$0xff]
  %v55 = vld [vmem:[#allocation2 + $0x48] sm:$0xff]
  %v56 = vld [vmem:[#allocation2 + $0x50] sm:$0xff]
  %v57 = vld [vmem:[#allocation2 + $0x58] sm:$0xff]
  %v58 = vld [vmem:[#allocation2 + $0x60] sm:$0xff]
  %v59 = vld [vmem:[#allocation2 + $0x68] sm:$0xff]
  %v60 = vld [vmem:[#allocation2 + $0x70] sm:$0xff]
  %v61 = vld [vmem:[#allocation2 + $0x78] sm:$0xff]
  %v62 = vld [vmem:[%s0] sm:$0xf]
  %v63 = vld [vmem:[%s0 + $0x4] sm:$0xf]
  %v64 = vld [vmem:[%s0 + $0x8] sm:$0xf]
  %v65 = vld [vmem:[%s0 + $0xc] sm:$0xf]
  %v66 = vld [vmem:[%s0 + $0x10] sm:$0xf]
  %v67 = vld [vmem:[%s0 + $0x14] sm:$0xf]
  %v68 = vld [vmem:[%s0 + $0x18] sm:$0xf]
  %v69 = vld [vmem:[%s0 + $0x1c] sm:$0xf]
  %v70 = vld [vmem:[%s0 + $0x20] sm:$0xf]
  %v71 = vld [vmem:[%s0 + $0x24] sm:$0xf]
  %v72 = vld [vmem:[%s0 + $0x28] sm:$0xf]
  %v73 = vld [vmem:[%s0 + $0x2c] sm:$0xf]
  %v74 = vld [vmem:[%s0 + $0x30] sm:$0xf]
  %v75 = vld [vmem:[%s0 + $0x34] sm:$0xf]
  %v76 = vld [vmem:[%s0 + $0x38] sm:$0xf]
  %v77 = vld [vmem:[%s0 + $0x3c] sm:$0xf]
  %v78 = vld [vmem:[%s1] sm:$0xf]
  %v79 = vld [vmem:[%s1 + $0x4] sm:$0xf]
  %v80 = vld [vmem:[%s1 + $0x8] sm:$0xf]
  %v81 = vld [vmem:[%s1 + $0xc] sm:$0xf]
  %v82 = vld [vmem:[%s1 + $0x10] sm:$0xf]
  %v83 = vld [vmem:[%s1 + $0x14] sm:$0xf]
  %v84 = vld [vmem:[%s1 + $0x18] sm:$0xf]
  %v85 = vld [vmem:[%s1 + $0x1c] sm:$0xf]
  %v86 = vld [vmem:[%s1 + $0x20] sm:$0xf]
  %v87 = vld [vmem:[%s1 + $0x24] sm:$0xf]
  %v88 = vld [vmem:[%s1 + $0x28] sm:$0xf]
  %v89 = vld [vmem:[%s1 + $0x2c] sm:$0xf]
  %v90 = vld [vmem:[%s1 + $0x30] sm:$0xf]
  %v91 = vld [vmem:[%s1 + $0x34] sm:$0xf]
  %v92 = vld [vmem:[%s1 + $0x38] sm:$0xf]
  %v93 = vld [vmem:[%s1 + $0x3c] sm:$0xf]
  %v110 = vunpack.c.l.b16 %v62
  %v111 = vunpack.c.l.b16 %v63
  %v112 = vunpack.c.l.b16 %v64
  %v113 = vunpack.c.l.b16 %v65
  %v114 = vunpack.c.l.b16 %v66
  %v115 = vunpack.c.l.b16 %v67
  %v116 = vunpack.c.l.b16 %v68
  %v117 = vunpack.c.l.b16 %v69
  %v118 = vunpack.c.l.b16 %v70
  %v119 = vunpack.c.l.b16 %v71
  %v120 = vunpack.c.l.b16 %v72
  %v121 = vunpack.c.l.b16 %v73
  %v122 = vunpack.c.l.b16 %v74
  %v123 = vunpack.c.l.b16 %v75
  %v124 = vunpack.c.l.b16 %v76
  %v125 = vunpack.c.l.b16 %v77
  %v126 = vpack.c.b16 %v111, %v110
  %v127 = vpack.c.b16 %v113, %v112
  %v128 = vpack.c.b16 %v115, %v114
  %v129 = vpack.c.b16 %v117, %v116
  %v130 = vpack.c.b16 %v119, %v118
  %v131 = vpack.c.b16 %v121, %v120
  %v132 = vpack.c.b16 %v123, %v122
  %v133 = vpack.c.b16 %v125, %v124
  %v158 = vunpack.c.l.b16 %v78
  %v159 = vunpack.c.l.b16 %v79
  %v160 = vunpack.c.l.b16 %v80
  %v161 = vunpack.c.l.b16 %v81
  %v162 = vunpack.c.l.b16 %v82
  %v163 = vunpack.c.l.b16 %v83
  %v164 = vunpack.c.l.b16 %v84
  %v165 = vunpack.c.l.b16 %v85
  %v166 = vunpack.c.l.b16 %v86
  %v167 = vunpack.c.l.b16 %v87
  %v168 = vunpack.c.l.b16 %v88
  %v169 = vunpack.c.l.b16 %v89
  %v170 = vunpack.c.l.b16 %v90
  %v171 = vunpack.c.l.b16 %v91
  %v172 = vunpack.c.l.b16 %v92
  %v173 = vunpack.c.l.b16 %v93
  %v174 = vpack.c.b16 %v159, %v158
  %v175 = vpack.c.b16 %v161, %v160
  %v176 = vpack.c.b16 %v163, %v162
  %v177 = vpack.c.b16 %v165, %v164
  %v178 = vpack.c.b16 %v167, %v166
  %v179 = vpack.c.b16 %v169, %v168
  %v180 = vpack.c.b16 %v171, %v170
  %v181 = vpack.c.b16 %v173, %v172
  %190 = vmatprep.subr.bf16.mxu0 0
  %191 = vmatpush1.bf16.msra.mxu0 %v174
  %192 = vmatprep.subr.bf16.mxu0 0
  %193 = vmatpush1.bf16.msra.mxu0 %v175
  %194 = vmatprep.subr.bf16.mxu0 0
  %195 = vmatpush1.bf16.msra.mxu0 %v176
  %196 = vmatprep.subr.bf16.mxu0 0
  %197 = vmatpush1.bf16.msra.mxu0 %v177
  %198 = vmatprep.subr.bf16.mxu0 0
  %199 = vmatpush1.bf16.msra.mxu0 %v178
  %200 = vmatprep.subr.bf16.mxu0 0
  %201 = vmatpush1.bf16.msra.mxu0 %v179
  %202 = vmatprep.subr.bf16.mxu0 0
  %203 = vmatpush1.bf16.msra.mxu0 %v180
  %204 = vmatprep.subr.bf16.mxu0 0
  %205 = vmatpush1.bf16.msra.mxu0 %v181
  %206 = vmatprep.subr.bf16.mxu0 0
  %207 = vmatpush1.bf16.msra.mxu0 0
  %208 = vmatprep.subr.bf16.mxu0 0
  %209 = vmatpush1.bf16.msra.mxu0 0
  %210 = vmatprep.subr.bf16.mxu0 0
  %211 = vmatpush1.bf16.msra.mxu0 0
  %212 = vmatprep.subr.bf16.mxu0 0
  %213 = vmatpush1.bf16.msra.mxu0 0
  %214 = vmatprep.subr.bf16.mxu0 0
  %215 = vmatpush1.bf16.msra.mxu0 0
  %216 = vmatprep.subr.bf16.mxu0 0
  %217 = vmatpush1.bf16.msra.mxu0 0
  %218 = vmatprep.subr.bf16.mxu0 0
  %219 = vmatpush1.bf16.msra.mxu0 0
  %220 = vmatprep.subr.bf16.mxu0 0
  %221 = vmatpush1.bf16.msra.mxu0 0
  %222 = vmatprep.mubr.bf16.mxu0 0
  %223 = vmatmul.mubr.bf16.gmra.mrb[0].mxu0 %v126
  %v224 = vpop.f32.mrb[0].mxu0
  %v225 = vadd.f32 0.0, %v224
  %v226 = vpop.f32.mrb[0].mxu0
  %v227 = vpop.f32.mrb[0].mxu0
  %v228 = vadd.f32 0.0, %v227
  %v229 = vpop.f32.mrb[0].mxu0
  %230 = vmatprep.mubr.bf16.mxu0 0
  %231 = vmatmul.mubr.bf16.gmra.mrb[0].mxu0 %v127
  %v232 = vpop.f32.mrb[0].mxu0
  %v233 = vadd.f32 0.0, %v232
  %v234 = vpop.f32.mrb[0].mxu0
  %v235 = vpop.f32.mrb[0].mxu0
  %v236 = vadd.f32 0.0, %v235
  %v237 = vpop.f32.mrb[0].mxu0
  %238 = vmatprep.mubr.bf16.mxu0 0
  %239 = vmatmul.mubr.bf16.gmra.mrb[0].mxu0 %v128
  %v240 = vpop.f32.mrb[0].mxu0
  %v241 = vadd.f32 0.0, %v240
  %v242 = vpop.f32.mrb[0].mxu0
  %v243 = vpop.f32.mrb[0].mxu0
  %v244 = vadd.f32 0.0, %v243
  %v245 = vpop.f32.mrb[0].mxu0
  %246 = vmatprep.mubr.bf16.mxu0 0
  %247 = vmatmul.mubr.bf16.gmra.mrb[0].mxu0 %v129
  %v248 = vpop.f32.mrb[0].mxu0
  %v249 = vadd.f32 0.0, %v248
  %v250 = vpop.f32.mrb[0].mxu0
  %v251 = vpop.f32.mrb[0].mxu0
  %v252 = vadd.f32 0.0, %v251
  %v253 = vpop.f32.mrb[0].mxu0
  %254 = vmatprep.mubr.bf16.mxu0 0
  %255 = vmatmul.mubr.bf16.gmra.mrb[0].mxu0 %v130
  %v256 = vpop.f32.mrb[0].mxu0
  %v257 = vadd.f32 0.0, %v256
  %v258 = vpop.f32.mrb[0].mxu0
  %v259 = vpop.f32.mrb[0].mxu0
  %v260 = vadd.f32 0.0, %v259
  %v261 = vpop.f32.mrb[0].mxu0
  %262 = vmatprep.mubr.bf16.mxu0 0
  %263 = vmatmul.mubr.bf16.gmra.mrb[0].mxu0 %v131
  %v264 = vpop.f32.mrb[0].mxu0
  %v265 = vadd.f32 0.0, %v264
  %v266 = vpop.f32.mrb[0].mxu0
  %v267 = vpop.f32.mrb[0].mxu0
  %v268 = vadd.f32 0.0, %v267
  %v269 = vpop.f32.mrb[0].mxu0
  %270 = vmatprep.mubr.bf16.mxu0 0
  %271 = vmatmul.mubr.bf16.gmra.mrb[0].mxu0 %v132
  %v272 = vpop.f32.mrb[0].mxu0
  %v273 = vadd.f32 0.0, %v272
  %v274 = vpop.f32.mrb[0].mxu0
  %v275 = vpop.f32.mrb[0].mxu0
  %v276 = vadd.f32 0.0, %v275
  %v277 = vpop.f32.mrb[0].mxu0
  %278 = vmatprep.mubr.bf16.mxu0 0
  %279 = vmatmul.mubr.bf16.gmra.mrb[0].mxu0 %v133
  %v280 = vpop.f32.mrb[0].mxu0
  %v281 = vadd.f32 0.0, %v280
  %v282 = vpop.f32.mrb[0].mxu0
  %v283 = vpop.f32.mrb[0].mxu0
  %v284 = vadd.f32 0.0, %v283
  %v285 = vpop.f32.mrb[0].mxu0
  %286 = vdwg.mxu0
  %v287 = vadd.f32 %v46, %v225
  %v288 = vadd.f32 %v47, %v228
  %v289 = vadd.f32 %v48, %v233
  %v290 = vadd.f32 %v49, %v236
  %v291 = vadd.f32 %v50, %v241
  %v292 = vadd.f32 %v51, %v244
  %v293 = vadd.f32 %v52, %v249
  %v294 = vadd.f32 %v53, %v252
  %v295 = vadd.f32 %v54, %v257
  %v296 = vadd.f32 %v55, %v260
  %v297 = vadd.f32 %v56, %v265
  %v298 = vadd.f32 %v57, %v268
  %v299 = vadd.f32 %v58, %v273
  %v300 = vadd.f32 %v59, %v276
  %v301 = vadd.f32 %v60, %v281
  %v302 = vadd.f32 %v61, %v284
  %303 = vst [vmem:[#allocation2] sm:$0xff] %v287
  %304 = vst [vmem:[#allocation2 + $0x8] sm:$0xff] %v288
  %305 = vst [vmem:[#allocation2 + $0x10] sm:$0xff] %v289
  %306 = vst [vmem:[#allocation2 + $0x18] sm:$0xff] %v290
  %307 = vst [vmem:[#allocation2 + $0x20] sm:$0xff] %v291
  %308 = vst [vmem:[#allocation2 + $0x28] sm:$0xff] %v292
  %309 = vst [vmem:[#allocation2 + $0x30] sm:$0xff] %v293
  %310 = vst [vmem:[#allocation2 + $0x38] sm:$0xff] %v294
  %311 = vst [vmem:[#allocation2 + $0x40] sm:$0xff] %v295
  %312 = vst [vmem:[#allocation2 + $0x48] sm:$0xff] %v296
  %313 = vst [vmem:[#allocation2 + $0x50] sm:$0xff] %v297
  %314 = vst [vmem:[#allocation2 + $0x58] sm:$0xff] %v298
  %315 = vst [vmem:[#allocation2 + $0x60] sm:$0xff] %v299
  %316 = vst [vmem:[#allocation2 + $0x68] sm:$0xff] %v300
  %317 = vst [vmem:[#allocation2 + $0x70] sm:$0xff] %v301
  %318 = vst [vmem:[#allocation2 + $0x78] sm:$0xff] %v302
  // Predicated region
  $region30: #{gin_forward.7} parent=0 // pred_check
    %p319 = pneg %p26
  $region31: #{gin_forward.7} parent=0 // pred_check_branch
    %321 = sbr.rel (%p319) target = $region33
  $region32: #{gin_forward.7} parent=0 // pred_region
    %v322 = vld [vmem:[#allocation2] sm:$0xff]
    %v323 = vld [vmem:[#allocation2 + $0x8] sm:$0xff]
    %v324 = vld [vmem:[#allocation2 + $0x10] sm:$0xff]
    %v325 = vld [vmem:[#allocation2 + $0x18] sm:$0xff]
    %v326 = vld [vmem:[#allocation2 + $0x20] sm:$0xff]
    %v327 = vld [vmem:[#allocation2 + $0x28] sm:$0xff]
    %v328 = vld [vmem:[#allocation2 + $0x30] sm:$0xff]
    %v329 = vld [vmem:[#allocation2 + $0x38] sm:$0xff]
    %v330 = vld [vmem:[#allocation2 + $0x40] sm:$0xff]
    %v331 = vld [vmem:[#allocation2 + $0x48] sm:$0xff]
    %v332 = vld [vmem:[#allocation2 + $0x50] sm:$0xff]
    %v333 = vld [vmem:[#allocation2 + $0x58] sm:$0xff]
    %v334 = vld [vmem:[#allocation2 + $0x60] sm:$0xff]
    %v335 = vld [vmem:[#allocation2 + $0x68] sm:$0xff]
    %v336 = vld [vmem:[#allocation2 + $0x70] sm:$0xff]
    %v337 = vld [vmem:[#allocation2 + $0x78] sm:$0xff]
    %v338 = vld [vmem:[%s2] sm:$0xff]
    %v339 = vld [vmem:[%s2 + $0x8] sm:$0xff]
    %v340 = vld [vmem:[%s2 + $0x10] sm:$0xff]
    %v341 = vld [vmem:[%s2 + $0x18] sm:$0xff]
    %v342 = vld [vmem:[%s2 + $0x20] sm:$0xff]
    %v343 = vld [vmem:[%s2 + $0x28] sm:$0xff]
    %v344 = vld [vmem:[%s2 + $0x30] sm:$0xff]
    %v345 = vld [vmem:[%s2 + $0x38] sm:$0xff]
    %v346 = vld [vmem:[%s2 + $0x40] sm:$0xff]
    %v347 = vld [vmem:[%s2 + $0x48] sm:$0xff]
    %v348 = vld [vmem:[%s2 + $0x50] sm:$0xff]
    %v349 = vld [vmem:[%s2 + $0x58] sm:$0xff]
    %v350 = vld [vmem:[%s2 + $0x60] sm:$0xff]
    %v351 = vld [vmem:[%s2 + $0x68] sm:$0xff]
    %v352 = vld [vmem:[%s2 + $0x70] sm:$0xff]
    %v353 = vld [vmem:[%s2 + $0x78] sm:$0xff]
    %v354 = vadd.f32 %v322, %v338
    %v355 = vadd.f32 %v323, %v339
    %v356 = vadd.f32 %v324, %v340
    %v357 = vadd.f32 %v325, %v341
    %v358 = vadd.f32 %v326, %v342
    %v359 = vadd.f32 %v327, %v343
    %v360 = vadd.f32 %v328, %v344
    %v361 = vadd.f32 %v329, %v345
    %v362 = vadd.f32 %v330, %v346
    %v363 = vadd.f32 %v331, %v347
    %v364 = vadd.f32 %v332, %v348
    %v365 = vadd.f32 %v333, %v349
    %v366 = vadd.f32 %v334, %v350
    %v367 = vadd.f32 %v335, %v351
    %v368 = vadd.f32 %v336, %v352
    %v369 = vadd.f32 %v337, %v353
    %v370 = vld [vmem:[%s4] sm:$0xff]
    %v371 = vld [vmem:[%s4 + $0x8] sm:$0xff]
    %v372 = vld [vmem:[%s4 + $0x10] sm:$0xff]
    %v373 = vld [vmem:[%s4 + $0x18] sm:$0xff]
    %v374 = vld [vmem:[%s4 + $0x20] sm:$0xff]
    %v375 = vld [vmem:[%s4 + $0x28] sm:$0xff]
    %v376 = vld [vmem:[%s4 + $0x30] sm:$0xff]
    %v377 = vld [vmem:[%s4 + $0x38] sm:$0xff]
    %v378 = vld [vmem:[%s4 + $0x40] sm:$0xff]
    %v379 = vld [vmem:[%s4 + $0x48] sm:$0xff]
    %v380 = vld [vmem:[%s4 + $0x50] sm:$0xff]
    %v381 = vld [vmem:[%s4 + $0x58] sm:$0xff]
    %v382 = vld [vmem:[%s4 + $0x60] sm:$0xff]
    %v383 = vld [vmem:[%s4 + $0x68] sm:$0xff]
    %v384 = vld [vmem:[%s4 + $0x70] sm:$0xff]
    %v385 = vld [vmem:[%s4 + $0x78] sm:$0xff]
    %v386 = vld [vmem:[%s5] sm:$0x1]
    %v388 = vlaneseq
    %v389 = vshrl.u32 %v388, 7
    %v390 = vsub.s32 0, %v389
    %v391 = vrot.slane %v386, %v390
    %393 = vmatprep.subr.mxu0 0.0
    %394 = vmatpush1.msra.mxu0 %v370
    %395 = vmatprep.subr.mxu0 0.0
    %396 = vmatpush1.msra.mxu0 %v371
    %397 = vmatprep.subr.mxu0 0.0
    %398 = vmatpush1.msra.mxu0 %v372
    %399 = vmatprep.subr.mxu0 0.0
    %400 = vmatpush1.msra.mxu0 %v373
    %401 = vmatprep.subr.mxu0 0.0
    %402 = vmatpush1.msra.mxu0 %v374
    %403 = vmatprep.subr.mxu0 0.0
    %404 = vmatpush1.msra.mxu0 %v375
    %405 = vmatprep.subr.mxu0 0.0
    %406 = vmatpush1.msra.mxu0 %v376
    %407 = vmatprep.subr.mxu0 0.0
    %408 = vmatpush1.msra.mxu0 %v377
    %409 = vmatprep.subr.mxu0 0.0
    %410 = vmatpush1.msra.mxu0 %v378
    %411 = vmatprep.subr.mxu0 0.0
    %412 = vmatpush1.msra.mxu0 %v379
    %413 = vmatprep.subr.mxu0 0.0
    %414 = vmatpush1.msra.mxu0 %v380
    %415 = vmatprep.subr.mxu0 0.0
    %416 = vmatpush1.msra.mxu0 %v381
    %417 = vmatprep.subr.mxu0 0.0
    %418 = vmatpush1.msra.mxu0 %v382
    %419 = vmatprep.subr.mxu0 0.0
    %420 = vmatpush1.msra.mxu0 %v383
    %421 = vmatprep.subr.mxu0 0.0
    %422 = vmatpush1.msra.mxu0 %v384
    %423 = vmatprep.subr.mxu0 0.0
    %424 = vmatpush1.msra.mxu0 %v385
    %425 = vmatprep.subr.mxu0 0.0
    %426 = vmatpush1.msra.mxu0 0.0
    %427 = vmatprep.subr.mxu0 0.0
    %428 = vmatpush1.msra.mxu0 0.0
    %429 = vmatprep.subr.mxu0 0.0
    %430 = vmatpush1.msra.mxu0 0.0
    %431 = vmatprep.subr.mxu0 0.0
    %432 = vmatpush1.msra.mxu0 0.0
    %433 = vmatprep.subr.mxu0 0.0
    %434 = vmatpush1.msra.mxu0 0.0
    %435 = vmatprep.subr.mxu0 0.0
    %436 = vmatpush1.msra.mxu0 0.0
    %437 = vmatprep.subr.mxu0 0.0
    %438 = vmatpush1.msra.mxu0 0.0
    %439 = vmatprep.subr.mxu0 0.0
    %440 = vmatpush1.msra.mxu0 0.0
    %441 = vmatprep.subr.mxu0 0.0
    %442 = vmatpush1.msra.mxu0 0.0
    %443 = vmatprep.subr.mxu0 0.0
    %444 = vmatpush1.msra.mxu0 0.0
    %445 = vmatprep.subr.mxu0 0.0
    %446 = vmatpush1.msra.mxu0 0.0
    %447 = vmatprep.subr.mxu0 0.0
    %448 = vmatpush1.msra.mxu0 0.0
    %449 = vmatprep.subr.mxu0 0.0
    %450 = vmatpush1.msra.mxu0 0.0
    %451 = vmatprep.subr.mxu0 0.0
    %452 = vmatpush1.msra.mxu0 0.0
    %453 = vmatprep.subr.mxu0 0.0
    %454 = vmatpush1.msra.mxu0 0.0
    %455 = vmatprep.subr.mxu0 0.0
    %456 = vmatpush1.msra.mxu0 0.0
    %457 = vmatprep.mubr.f32.mxu0 0.0
    %458 = vmatmul.mubr.f32.gmra.mrb[0].mxu0 %v354
    %v459 = vpop.f32.mrb[0].mxu0
    %v460 = vadd.f32 %v391, %v459
    %v461 = vpop.f32.mrb[0].mxu0
    %462 = vmatprep.mubr.f32.mxu0 0.0
    %463 = vmatmul.mubr.f32.gmra.mrb[0].mxu0 %v355
    %v464 = vpop.f32.mrb[0].mxu0
    %v465 = vadd.f32 %v391, %v464
    %v466 = vpop.f32.mrb[0].mxu0
    %467 = vmatprep.mubr.f32.mxu0 0.0
    %468 = vmatmul.mubr.f32.gmra.mrb[0].mxu0 %v356
    %v469 = vpop.f32.mrb[0].mxu0
    %v470 = vadd.f32 %v391, %v469
    %v471 = vpop.f32.mrb[0].mxu0
    %472 = vmatprep.mubr.f32.mxu0 0.0
    %473 = vmatmul.mubr.f32.gmra.mrb[0].mxu0 %v357
    %v474 = vpop.f32.mrb[0].mxu0
    %v475 = vadd.f32 %v391, %v474
    %v476 = vpop.f32.mrb[0].mxu0
    %477 = vmatprep.mubr.f32.mxu0 0.0
    %478 = vmatmul.mubr.f32.gmra.mrb[0].mxu0 %v358
    %v479 = vpop.f32.mrb[0].mxu0
    %v480 = vadd.f32 %v391, %v479
    %v481 = vpop.f32.mrb[0].mxu0
    %482 = vmatprep.mubr.f32.mxu0 0.0
    %483 = vmatmul.mubr.f32.gmra.mrb[0].mxu0 %v359
    %v484 = vpop.f32.mrb[0].mxu0
    %v485 = vadd.f32 %v391, %v484
    %v486 = vpop.f32.mrb[0].mxu0
    %487 = vmatprep.mubr.f32.mxu0 0.0
    %488 = vmatmul.mubr.f32.gmra.mrb[0].mxu0 %v360
    %v489 = vpop.f32.mrb[0].mxu0
    %v490 = vadd.f32 %v391, %v489
    %v491 = vpop.f32.mrb[0].mxu0
    %492 = vmatprep.mubr.f32.mxu0 0.0
    %493 = vmatmul.mubr.f32.gmra.mrb[0].mxu0 %v361
    %v494 = vpop.f32.mrb[0].mxu0
    %v495 = vadd.f32 %v391, %v494
    %v496 = vpop.f32.mrb[0].mxu0
    %497 = vmatprep.mubr.f32.mxu0 0.0
    %498 = vmatmul.mubr.f32.gmra.mrb[0].mxu0 %v362
    %v499 = vpop.f32.mrb[0].mxu0
    %v500 = vadd.f32 %v391, %v499
    %v501 = vpop.f32.mrb[0].mxu0
    %502 = vmatprep.mubr.f32.mxu0 0.0
    %503 = vmatmul.mubr.f32.gmra.mrb[0].mxu0 %v363
    %v504 = vpop.f32.mrb[0].mxu0
    %v505 = vadd.f32 %v391, %v504
    %v506 = vpop.f32.mrb[0].mxu0
    %507 = vmatprep.mubr.f32.mxu0 0.0
    %508 = vmatmul.mubr.f32.gmra.mrb[0].mxu0 %v364
    %v509 = vpop.f32.mrb[0].mxu0
    %v510 = vadd.f32 %v391, %v509
    %v511 = vpop.f32.mrb[0].mxu0
    %512 = vmatprep.mubr.f32.mxu0 0.0
    %513 = vmatmul.mubr.f32.gmra.mrb[0].mxu0 %v365
    %v514 = vpop.f32.mrb[0].mxu0
    %v515 = vadd.f32 %v391, %v514
    %v516 = vpop.f32.mrb[0].mxu0
    %517 = vmatprep.mubr.f32.mxu0 0.0
    %518 = vmatmul.mubr.f32.gmra.mrb[0].mxu0 %v366
    %v519 = vpop.f32.mrb[0].mxu0
    %v520 = vadd.f32 %v391, %v519
    %v521 = vpop.f32.mrb[0].mxu0
    %522 = vmatprep.mubr.f32.mxu0 0.0
    %523 = vmatmul.mubr.f32.gmra.mrb[0].mxu0 %v367
    %v524 = vpop.f32.mrb[0].mxu0
    %v525 = vadd.f32 %v391, %v524
    %v526 = vpop.f32.mrb[0].mxu0
    %527 = vmatprep.mubr.f32.mxu0 0.0
    %528 = vmatmul.mubr.f32.gmra.mrb[0].mxu0 %v368
    %v529 = vpop.f32.mrb[0].mxu0
    %v530 = vadd.f32 %v391, %v529
    %v531 = vpop.f32.mrb[0].mxu0
    %532 = vmatprep.mubr.f32.mxu0 0.0
    %533 = vmatmul.mubr.f32.gmra.mrb[0].mxu0 %v369
    %v534 = vpop.f32.mrb[0].mxu0
    %v535 = vadd.f32 %v391, %v534
    %v536 = vpop.f32.mrb[0].mxu0
    %537 = vdwg.mxu0
    %v538 = vld [vmem:[%s3] sm:$0xff]
    %v539 = vld [vmem:[%s3 + $0x8] sm:$0xff]
    %v540 = vld [vmem:[%s3 + $0x10] sm:$0xff]
    %v541 = vld [vmem:[%s3 + $0x18] sm:$0xff]
    %v542 = vld [vmem:[%s3 + $0x20] sm:$0xff]
    %v543 = vld [vmem:[%s3 + $0x28] sm:$0xff]
    %v544 = vld [vmem:[%s3 + $0x30] sm:$0xff]
    %v545 = vld [vmem:[%s3 + $0x38] sm:$0xff]
    %v546 = vld [vmem:[%s3 + $0x40] sm:$0xff]
    %v547 = vld [vmem:[%s3 + $0x48] sm:$0xff]
    %v548 = vld [vmem:[%s3 + $0x50] sm:$0xff]
    %v549 = vld [vmem:[%s3 + $0x58] sm:$0xff]
    %v550 = vld [vmem:[%s3 + $0x60] sm:$0xff]
    %v551 = vld [vmem:[%s3 + $0x68] sm:$0xff]
    %v552 = vld [vmem:[%s3 + $0x70] sm:$0xff]
    %v553 = vld [vmem:[%s3 + $0x78] sm:$0xff]
    %555 = vset.pattern.permute.xlu0 0
    %556 = vperm.xlu0 %555, %v538
    %v557 = vpop.permute.xlu0 %556
    %560 = vset.pattern.permute.xlu0 0
    %561 = vperm.xlu0 %560, %v539
    %v562 = vpop.permute.xlu0 %561
    %565 = vset.pattern.permute.xlu0 0
    %566 = vperm.xlu0 %565, %v540
    %v567 = vpop.permute.xlu0 %566
    %570 = vset.pattern.permute.xlu0 0
    %571 = vperm.xlu0 %570, %v541
    %v572 = vpop.permute.xlu0 %571
    %575 = vset.pattern.permute.xlu0 0
    %576 = vperm.xlu0 %575, %v542
    %v577 = vpop.permute.xlu0 %576
    %580 = vset.pattern.permute.xlu0 0
    %581 = vperm.xlu0 %580, %v543
    %v582 = vpop.permute.xlu0 %581
    %585 = vset.pattern.permute.xlu0 0
    %586 = vperm.xlu0 %585, %v544
    %v587 = vpop.permute.xlu0 %586
    %590 = vset.pattern.permute.xlu0 0
    %591 = vperm.xlu0 %590, %v545
    %v592 = vpop.permute.xlu0 %591
    %595 = vset.pattern.permute.xlu0 0
    %596 = vperm.xlu0 %595, %v546
    %v597 = vpop.permute.xlu0 %596
    %600 = vset.pattern.permute.xlu0 0
    %601 = vperm.xlu0 %600, %v547
    %v602 = vpop.permute.xlu0 %601
    %605 = vset.pattern.permute.xlu0 0
    %606 = vperm.xlu0 %605, %v548
    %v607 = vpop.permute.xlu0 %606
    %610 = vset.pattern.permute.xlu0 0
    %611 = vperm.xlu0 %610, %v549
    %v612 = vpop.permute.xlu0 %611
    %615 = vset.pattern.permute.xlu0 0
    %616 = vperm.xlu0 %615, %v550
    %v617 = vpop.permute.xlu0 %616
    %620 = vset.pattern.permute.xlu0 0
    %621 = vperm.xlu0 %620, %v551
    %v622 = vpop.permute.xlu0 %621
    %625 = vset.pattern.permute.xlu0 0
    %626 = vperm.xlu0 %625, %v552
    %v627 = vpop.permute.xlu0 %626
    %630 = vset.pattern.permute.xlu0 0
    %631 = vperm.xlu0 %630, %v553
    %v632 = vpop.permute.xlu0 %631
    %v634 = vmul.f32 %v460, %v557
    %v635 = vmul.f32 %v465, %v562
    %v636 = vmul.f32 %v470, %v567
    %v637 = vmul.f32 %v475, %v572
    %v638 = vmul.f32 %v480, %v577
    %v639 = vmul.f32 %v485, %v582
    %v640 = vmul.f32 %v490, %v587
    %v641 = vmul.f32 %v495, %v592
    %v642 = vmul.f32 %v500, %v597
    %v643 = vmul.f32 %v505, %v602
    %v644 = vmul.f32 %v510, %v607
    %v645 = vmul.f32 %v515, %v612
    %v646 = vmul.f32 %v520, %v617
    %v647 = vmul.f32 %v525, %v622
    %v648 = vmul.f32 %v530, %v627
    %v649 = vmul.f32 %v535, %v632
    %650 = vst [vmem:[%s6] sm:$0xff] %v634
    %651 = vst [vmem:[%s6 + $0x8] sm:$0xff] %v635
    %652 = vst [vmem:[%s6 + $0x10] sm:$0xff] %v636
    %653 = vst [vmem:[%s6 + $0x18] sm:$0xff] %v637
    %654 = vst [vmem:[%s6 + $0x20] sm:$0xff] %v638
    %655 = vst [vmem:[%s6 + $0x28] sm:$0xff] %v639
    %656 = vst [vmem:[%s6 + $0x30] sm:$0xff] %v640
    %657 = vst [vmem:[%s6 + $0x38] sm:$0xff] %v641
    %658 = vst [vmem:[%s6 + $0x40] sm:$0xff] %v642
    %659 = vst [vmem:[%s6 + $0x48] sm:$0xff] %v643
    %660 = vst [vmem:[%s6 + $0x50] sm:$0xff] %v644
    %661 = vst [vmem:[%s6 + $0x58] sm:$0xff] %v645
    %662 = vst [vmem:[%s6 + $0x60] sm:$0xff] %v646
    %663 = vst [vmem:[%s6 + $0x68] sm:$0xff] %v647
    %664 = vst [vmem:[%s6 + $0x70] sm:$0xff] %v648
    %665 = vst [vmem:[%s6 + $0x78] sm:$0xff] %v649
    %v666 = vadd.f32 %v634, %v635
    %v667 = vadd.f32 %v666, %v636
    %v668 = vadd.f32 %v667, %v637
    %v669 = vadd.f32 %v668, %v638
    %v670 = vadd.f32 %v669, %v639
    %v671 = vadd.f32 %v670, %v640
    %v672 = vadd.f32 %v671, %v641
    %v673 = vadd.f32 %v672, %v642
    %v674 = vadd.f32 %v673, %v643
    %v675 = vadd.f32 %v674, %v644
    %v676 = vadd.f32 %v675, %v645
    %v677 = vadd.f32 %v676, %v646
    %v678 = vadd.f32 %v677, %v647
    %v679 = vadd.f32 %v678, %v648
    %v680 = vadd.f32 %v679, %v649
    %v681 = vrot.slane %v680, 4
    %v682 = vadd.f32 %v680, %v681
    %v683 = vrot.slane %v682, 2
    %v684 = vadd.f32 %v682, %v683
    %v685 = vrot.slane %v684, 1
    %v686 = vadd.f32 %v684, %v685
    %v687 = vmul.f32 %v634, %v634
    %v688 = vmul.f32 %v635, %v635
    %v689 = vmul.f32 %v636, %v636
    %v690 = vmul.f32 %v637, %v637
    %v691 = vmul.f32 %v638, %v638
    %v692 = vmul.f32 %v639, %v639
    %v693 = vmul.f32 %v640, %v640
    %v694 = vmul.f32 %v641, %v641
    %v695 = vmul.f32 %v642, %v642
    %v696 = vmul.f32 %v643, %v643
    %v697 = vmul.f32 %v644, %v644
    %v698 = vmul.f32 %v645, %v645
    %v699 = vmul.f32 %v646, %v646
    %v700 = vmul.f32 %v647, %v647
    %v701 = vmul.f32 %v648, %v648
    %v702 = vmul.f32 %v649, %v649
    %v703 = vadd.f32 %v687, %v688
    %v704 = vadd.f32 %v703, %v689
    %v705 = vadd.f32 %v704, %v690
    %v706 = vadd.f32 %v705, %v691
    %v707 = vadd.f32 %v706, %v692
    %v708 = vadd.f32 %v707, %v693
    %v709 = vadd.f32 %v708, %v694
    %v710 = vadd.f32 %v709, %v695
    %v711 = vadd.f32 %v710, %v696
    %v712 = vadd.f32 %v711, %v697
    %v713 = vadd.f32 %v712, %v698
    %v714 = vadd.f32 %v713, %v699
    %v715 = vadd.f32 %v714, %v700
    %v716 = vadd.f32 %v715, %v701
    %v717 = vadd.f32 %v716, %v702
    %v718 = vrot.slane %v717, 4
    %v719 = vadd.f32 %v717, %v718
    %v720 = vrot.slane %v719, 2
    %v721 = vadd.f32 %v719, %v720
    %v722 = vrot.slane %v721, 1
    %v723 = vadd.f32 %v721, %v722
    %724 = vst [vmem:[%s7] sm:$0xff] %v686
    %725 = vst [vmem:[%s7 + $0x8] sm:$0xff] %v723
  $region33: #{gin_forward.7} parent=0 // pred_fallthru
    _
  // Predicated region
  $region34: #{gin_forward.7} parent=0 // pred_check
    _
  $region35: #{gin_forward.7} parent=0 // pred_check_branch
    %727 = sbr.rel (0) target = $region37
  $region36: #{gin_forward.7} parent=0 // pred_region
    _
  $region37: #{gin_forward.7} parent=0 // pred_fallthru
    _
  // Predicated region
  $region38: #{gin_forward.7} parent=0 // pred_check
    _
  $region39: #{gin_forward.7} parent=0 // pred_check_branch
    %729 = sbr.rel (0) target = $region41
  $region40: #{gin_forward.7} parent=0 // pred_region
    _
  $region41: #{gin_forward.7} parent=0 // pred_fallthru
    _
  // Predicated region
  $region42: #{gin_forward.7} parent=0 // pred_check
    _
  $region43: #{gin_forward.7} parent=0 // pred_check_branch
    %731 = sbr.rel (0) target = $region45
  $region44: #{gin_forward.7} parent=0 // pred_region
    _
  $region45: #{gin_forward.7} parent=0 // pred_fallthru
    _
  // Predicated region
  $region46: #{gin_forward.7} parent=0 // pred_check
    _
  $region47: #{gin_forward.7} parent=0 // pred_check_branch
    %733 = sbr.rel (0) target = $region49
  $region48: #{gin_forward.7} parent=0 // pred_region
    _
  $region49: #{gin_forward.7} parent=0 // pred_fallthru
    _

</llo_original>
